<compile_context>
chip_gen: v5e
topology: v5e:2x2
jax: 0.10.0
libtpu: 0.0.40
codegen_flags: <defaults>
</compile_context>

<pallas_src>
import functools
import math

import jax
import jax.numpy as jnp
import numpy as np
from jax import lax
from jax.experimental import pallas as pl
from jax.experimental.pallas import tpu as pltpu


# ----------------------------------------------------------------------------
# Helpers
# ----------------------------------------------------------------------------
def _pos_apply(pos3, w3):
    """[nb, S, P] x [nb, P, F] -> [nb, S, F] for tiny static P, on the VPU.

    Replaces K=P(=2) MXU matmuls with an unrolled broadcast multiply-accumulate.
    """
    acc = pos3[:, :, 0:1] * w3[:, 0:1, :]
    for p in range(1, pos3.shape[-1]):
        acc = acc + pos3[:, :, p:p + 1] * w3[:, p:p + 1, :]
    return acc


# ----------------------------------------------------------------------------
# Pallas kernel
# ----------------------------------------------------------------------------
def _sp_galerkin_kernel(q_ref, k_ref, v_ref, pos_ref,
                        wq_ref, wk_ref, wv_ref, bias_ref,
                        mavg_ref, mask_ref, maskhp_ref,
                        wfcf_ref, wfcp_ref, wfcps_ref,
                        out_ref, *, norm_eps):
    nb, S, D = q_ref.shape
    P = pos_ref.shape[2]
    HP = maskhp_ref.shape[1]
    H = HP // P
    R = nb * S
    f32 = jnp.float32
    cdt = wq_ref.dtype                       # MXU compute dtype (bf16 or f32)
    inv_s = 1.0 / S

    # -- merge (nb, S) so projections / LN run on one lane-dense [R, D] slab --
    q2 = q_ref[...].reshape(R, D).astype(cdt)
    k2 = k_ref[...].reshape(R, D).astype(cdt)
    v2 = v_ref[...].reshape(R, D).astype(cdt)
    pos3 = pos_ref[...].astype(f32)          # [nb, S, P], P tiny -> keep f32

    b = bias_ref[...]                        # [8, D] stacked bias / LN-affine rows
    bq, bk, bv = b[0:1], b[1:2], b[2:3]
    lnw_k, lnb_k, lnw_v, lnb_v = b[3:4], b[4:5], b[5:6], b[6:7]
    bfc = b[7:8]

    # ---- QKV projections (MXU, low-precision operands, f32 accumulation) ----
    qp = jnp.dot(q2, wq_ref[...], preferred_element_type=f32) + bq
    kp = jnp.dot(k2, wk_ref[...], preferred_element_type=f32) + bk
    vp = jnp.dot(v2, wv_ref[...], preferred_element_type=f32) + bv

    # ---- per-head LayerNorm of K, V (stats in f32, two-pass variance) -------
    # K and V statistics batched into single [2R, D] averaging matmuls.
    mavg = mavg_ref[...]                     # block-diagonal 1/dh averaging matrix
    kv = jnp.concatenate([kp, vp], axis=0)   # [2R, D]
    mu = jnp.dot(kv, mavg, preferred_element_type=f32)
    cen = kv - mu
    var = jnp.dot(cen * cen, mavg, preferred_element_type=f32)
    nrm = cen * lax.rsqrt(var + norm_eps)
    kn = nrm[:R] * lnw_k + lnb_k
    vn = nrm[R:] * lnw_v + lnb_v

    qp3 = qp.reshape(nb, S, D)
    kn3 = kn.reshape(nb, S, D)
    vn3 = vn.reshape(nb, S, D)
    qp3_c = qp3.astype(cdt)

    # ---- Galerkin attention in the lane-aligned D=128 feature space ---------
    # The [pos|feat] head concat of the reference factors into a block-masked
    # K^T V term plus thin P-wide position cross-terms, so no matmul carries the
    # 136 -> 256 lane padding.  (Batched 'nsd,nse->nde' contraction; the MXU
    # takes the transposed operand natively -- verify via pl.lower_as_mlir if
    # Mosaic ever emits an explicit XLU transpose here.)
    ktv = jnp.einsum('nsd,nse->nde', kn3.astype(cdt), vn3.astype(cdt),
                     preferred_element_type=f32)            # [nb, D, D]
    ktv_m = ktv * mask_ref[...]              # per-head block mask, 1/S folded in

    ptv = jnp.einsum('nsp,nsd->npd', pos3, vn3, preferred_element_type=f32)   # [nb, P, D]
    ktp = jnp.einsum('nsd,nsp->ndp', kn3, pos3, preferred_element_type=f32)   # [nb, D, P]
    ptp = jnp.einsum('nsp,nsq->npq', pos3, pos3, preferred_element_type=f32)  # [nb, P, P]
    ktp_m = jnp.tile(ktp, (1, 1, H)) * maskhp_ref[...]      # [nb, D, H*P], 1/S folded in

    wfc_f = wfcf_ref[...]                    # [D, D]    fc rows for feature channels
    wfc_p = wfcp_ref[...]                    # [H*P, D]  fc rows for position channels
    wfc_ps = wfcps_ref[...]                  # [P, D]    sum over heads of position rows

    if S > D:
        # Fold the output FC into per-row [D, D] weights (cheaper when S > D).
        w2 = (jnp.dot(ktv_m.reshape(nb * D, D), wfc_f, preferred_element_type=f32)
              + jnp.dot(ktp_m.reshape(nb * D, HP), wfc_p, preferred_element_type=f32)
              ).reshape(nb, D, D)
        wp = ((jnp.dot(ptv.reshape(nb * P, D), wfc_f, preferred_element_type=f32)
               + jnp.dot(ptp.reshape(nb * P, P), wfc_ps, preferred_element_type=f32)
               ) * inv_s).reshape(nb, P, D)
        out3 = (jnp.einsum('nsd,ndf->nsf', qp3_c, w2.astype(cdt),
                           preferred_element_type=f32)
                + _pos_apply(pos3, wp) + bfc)
    else:
        # Unfolded order (cheaper when S <= D): attention first, FC second.
        attn_f = (jnp.einsum('nsd,nde->nse', qp3_c, ktv_m.astype(cdt),
                             preferred_element_type=f32)
                  + _pos_apply(pos3, ptv) * inv_s)                   # [nb, S, D]
        qktp = jnp.einsum('nsd,ndp->nsp', qp3_c, ktp_m.astype(cdt),
                          preferred_element_type=f32)                # [nb, S, H*P]
        pp = _pos_apply(pos3, ptp) * inv_s                           # [nb, S, P]
        out2 = (jnp.dot(attn_f.reshape(R, D).astype(cdt), wfc_f.astype(cdt),
                        preferred_element_type=f32)
                + jnp.dot(qktp.reshape(R, HP), wfc_p, preferred_element_type=f32)
                + jnp.dot(pp.reshape(R, P), wfc_ps, preferred_element_type=f32)
                + bfc)
        out3 = out2.reshape(nb, S, D)

    out_ref[...] = out3.astype(out_ref.dtype)        # lane-dense [*, 128] store

    # TODO(synk): dropout (attn_droprate / fc_droprate) treated as identity (eval / p=0).
    # TODO(synk): for S large enough to overflow VMEM (S >~ 4-8k on v7x's 64 MiB),
    #             add an 'arbitrary' S-tile grid axis with a K^T V accumulator in
    #             VMEM scratch (pl.when init/finalize) and a second Q-streaming pass.


# ----------------------------------------------------------------------------
# Tiling / VMEM planning
# ----------------------------------------------------------------------------
def _plan_tiles(N, S, D, P, HP, in_itemsize, out_itemsize, cdt_itemsize):
    """Pick rows-per-grid-step (nb) and a generation-aware VMEM limit."""
    def rup(x, m):
        return ((x + m - 1) // m) * m

    try:
        vmem_cap = int(pltpu.get_tpu_info().vmem_capacity_bytes)
    except Exception:
        vmem_cap = 64 << 20                 # conservative (v7x-sized) fallback
    budget = (vmem_cap * 3) // 4            # leave headroom for compiler scratch

    p_pad = rup(P, 128)
    hp_pad = rup(HP, 128)

    # Constants (each double-buffered by the BlockSpec pipeline).
    const_b = 2 * (3 * D * D * cdt_itemsize         # wq / wk / wv
                   + 3 * D * D * 4                  # mavg, mask, wfc_feat
                   + D * hp_pad * 4                 # mask_hp
                   + rup(HP, 8) * D * 4             # wfc_pos
                   + rup(P, 8) * D * 4              # wfc_pos_sum
                   + 8 * D * 4)                     # stacked bias rows

    def step_bytes(nb):
        R = nb * S
        io = 2 * nb * S * ((3 * D + p_pad) * in_itemsize + D * out_itemsize)
        tmp = R * D * (8 * 4 + 3 * cdt_itemsize)    # f32 slabs + low-precision copies
        tmp += nb * D * (2 * D + hp_pad) * 4        # ktv / folded weights / ktp tiles
        return io + tmp

    nb = 1
    nb_cap = max(1, N // 2)     # keep >= 2 grid steps so v7x can shard the
                                # "parallel" batch axis over its 2 TensorCores
    for cand in range(2, nb_cap + 1):
        if N % cand:
            continue
        if const_b + step_bytes(cand) > budget:
            break
        nb = cand
        if cand * S >= 1024:    # enough rows to amortize ~0.35us/step overhead
            break
    return nb, budget


# ----------------------------------------------------------------------------
# Wrapper
# ----------------------------------------------------------------------------
def sp_galerkin_attention(Q, K, V, position, params, *,
                          num_head, dim_position, norm_eps,
                          compute_dtype=jnp.bfloat16):
    N, S, D = Q.shape
    H = num_head
    dh = D // H
    P = dim_position
    HP = H * P
    cdt = jnp.dtype(compute_dtype)

    # ---- host-side constant matrices (built once per trace) -----------------
    mavg = np.zeros((D, D), np.float32)      # per-head 1/dh averaging (LN stats)
    mask = np.zeros((D, D), np.float32)      # per-head block mask for K^T V, 1/S
    mask_hp = np.zeros((D, HP), np.float32)  # per-head block mask for K^T pos, 1/S
    for h in range(H):
        fsl = slice(h * dh, (h + 1) * dh)
        mavg[fsl, fsl] = 1.0 / dh
        mask[fsl, fsl] = 1.0 / S
        mask_hp[fsl, h * P:(h + 1) * P] = 1.0 / S

    # fc weight rows are ordered head-major [pos | feat]; split them once so the
    # kernel never touches the lane-unaligned Dc = H*(P+dh) axis.
    wfc_t3 = params['fc_weight_t'].reshape(H, P + dh, D)
    wfc_pos = wfc_t3[:, :P, :].reshape(HP, D).astype(jnp.float32)
    wfc_feat = wfc_t3[:, P:, :].reshape(D, D).astype(jnp.float32)
    wfc_pos_sum = wfc_t3[:, :P, :].sum(axis=0).astype(jnp.float32)

    biases = jnp.stack([
        params['bias_Q'], params['bias_K'], params['bias_V'],
        params['ln_weight_K'].reshape(-1), params['ln_bias_K'].reshape(-1),
        params['ln_weight_V'].reshape(-1), params['ln_bias_V'].reshape(-1),
        params['fc_bias'],
    ], axis=0).astype(jnp.float32)           # one [8, D] sublane tile

    wq = params['weight_Q'].astype(cdt)      # pre-cast once: MXU operands
    wk = params['weight_K'].astype(cdt)
    wv = params['weight_V'].astype(cdt)

    nb, vmem_limit = _plan_tiles(N, S, D, P, HP,
                                 jnp.dtype(Q.dtype).itemsize,
                                 jnp.dtype(Q.dtype).itemsize,
                                 cdt.itemsize)

    kernel = functools.partial(_sp_galerkin_kernel, norm_eps=norm_eps)

    const = lambda shape: pl.BlockSpec(shape, lambda n: (0,) * len(shape))
    batch3 = lambda last: pl.BlockSpec((nb, S, last), lambda n: (n, 0, 0))

    in_specs = [
        batch3(D), batch3(D), batch3(D), batch3(P),
        const((D, D)), const((D, D)), const((D, D)),        # wq, wk, wv
        const((8, D)),                                       # stacked bias rows
        const((D, D)), const((D, D)), const((D, HP)),        # mavg, mask, mask_hp
        const((D, D)), const((HP, D)), const((P, D)),        # wfc_feat, wfc_pos, wfc_pos_sum
    ]
    out_specs = pl.BlockSpec((nb, S, D), lambda n: (n, 0, 0))

    return pl.pallas_call(
        kernel,
        out_shape=jax.ShapeDtypeStruct((N, S, D), Q.dtype),
        grid_spec=pltpu.PrefetchScalarGridSpec(
            num_scalar_prefetch=0,
            grid=(N // nb,),
            in_specs=in_specs,
            out_specs=out_specs),
        compiler_params=pltpu.CompilerParams(
            dimension_semantics=("parallel",),   # batch rows are independent
            vmem_limit_bytes=int(vmem_limit)),
    )(Q, K, V, position,
      wq, wk, wv, biases,
      jnp.asarray(mavg), jnp.asarray(mask), jnp.asarray(mask_hp),
      wfc_feat, wfc_pos, wfc_pos_sum)


# ----------------------------------------------------------------------------
# Deterministic parameter init (mirrors the module's _reset_parameters)
# ----------------------------------------------------------------------------
def init_params(key, dim_hidden, num_head, dim_position,
                xavier=1.0, diagonal=0.1, symmetric=True):
    D = dim_hidden
    dh = D // num_head
    fc_in = D + dim_position * num_head
    keys = jax.random.split(key, 8)

    bound = xavier * math.sqrt(6.0 / (D + D))     # xavier_uniform_ on [D, D]

    def proj_w(k):
        w = jax.random.uniform(k, (D, D), jnp.float32, -bound, bound)
        if diagonal > 0:
            w = w + diagonal * jnp.eye(D, dtype=jnp.float32)
        if symmetric:
            w = w + w.T
        return w

    fc_bound = 1.0 / math.sqrt(fc_in)             # torch.nn.Linear default init scale
    return dict(
        weight_Q=proj_w(keys[0]),
        weight_K=proj_w(keys[1]),
        weight_V=proj_w(keys[2]),
        bias_Q=jnp.zeros((D,), jnp.float32),
        bias_K=jnp.zeros((D,), jnp.float32),
        bias_V=jnp.zeros((D,), jnp.float32),
        ln_weight_K=jnp.ones((num_head, dh), jnp.float32),
        ln_bias_K=jnp.zeros((num_head, dh), jnp.float32),
        ln_weight_V=jnp.ones((num_head, dh), jnp.float32),
        ln_bias_V=jnp.zeros((num_head, dh), jnp.float32),
        # Stored already transposed ([fc_in, D]) so no transpose per forward.
        fc_weight_t=jax.random.uniform(keys[3], (fc_in, D), jnp.float32,
                                       -fc_bound, fc_bound),
        fc_bias=jax.random.uniform(keys[4], (D,), jnp.float32,
                                   -fc_bound, fc_bound),
    )


# ----------------------------------------------------------------------------
# Plain-JAX reference (for correctness check)
# ----------------------------------------------------------------------------
def reference_forward(Q, K, V, position, params, *,
                      num_head, dim_position, norm_eps):
    N, S, D = Q.shape
    H = num_head
    dh = D // H
    P = dim_position

    def proj(x, w, b):
        return x @ w + b

    def ln(x, w, b):   # x: [N, S, H, dh]; w,b: [H, dh]
        mu = x.mean(-1, keepdims=True)
        var = ((x - mu) ** 2).mean(-1, keepdims=True)
        return (x - mu) / jnp.sqrt(var + norm_eps) * w + b

    qp = proj(Q, params['weight_Q'], params['bias_Q']).reshape(N, S, H, dh)
    kp = ln(proj(K, params['weight_K'], params['bias_K']).reshape(N, S, H, dh),
            params['ln_weight_K'], params['ln_bias_K'])
    vp = ln(proj(V, params['weight_V'], params['bias_V']).reshape(N, S, H, dh),
            params['ln_weight_V'], params['ln_bias_V'])

    qp, kp, vp = [jnp.transpose(x, (0, 2, 1, 3)) for x in (qp, kp, vp)]  # [N,H,S,dh]
    posb = jnp.broadcast_to(position[:, None, :, :], (N, H, S, P))
    qc = jnp.concatenate([posb, qp], axis=-1)
    kc = jnp.concatenate([posb, kp], axis=-1)
    vc = jnp.concatenate([posb, vp], axis=-1)

    ktv = jnp.einsum('nhsd,nhse->nhde', kc, vc) / S
    x = jnp.einsum('nhsd,nhde->nhse', qc, ktv)                 # [N,H,S,P+dh]
    x = jnp.transpose(x, (0, 2, 1, 3)).reshape(N, S, H * (P + dh))
    return x @ params['fc_weight_t'] + params['fc_bias']


# ----------------------------------------------------------------------------
if __name__ == "__main__":
    # Module constraints: dim_hidden % 128 == 0 and dim_hidden // num_head == 32.
    dim_hidden, num_head, dim_position, norm_eps = 128, 4, 2, 1e-5

    root = jax.random.PRNGKey(0)
    kparam, kq, kk, kv, kpos = jax.random.split(root, 5)
    params = init_params(kparam, dim_hidden, num_head, dim_position,
                         xavier=1.0, diagonal=0.1, symmetric=True)

    # (N, S): S=64 exercises the unfolded-FC path, S=256 the folded-FC path.
    for (N, S) in [(2, 64), (2, 256)]:
        Q = jax.random.normal(kq, (N, S, dim_hidden), jnp.float32)
        K = jax.random.normal(kk, (N, S, dim_hidden), jnp.float32)
        V = jax.random.normal(kv, (N, S, dim_hidden), jnp.float32)
        position = jax.random.normal(kpos, (N, S, dim_position), jnp.float32)

        ref = jax.block_until_ready(
            reference_forward(Q, K, V, position, params,
                              num_head=num_head, dim_position=dim_position,
                              norm_eps=norm_eps))

        for cdt, tol in [(jnp.float32, 2e-2), (jnp.bfloat16, 5e-2)]:
            out = jax.block_until_ready(
                sp_galerkin_attention(Q, K, V, position, params,
                                      num_head=num_head,
                                      dim_position=dim_position,
                                      norm_eps=norm_eps,
                                      compute_dtype=cdt))
            np.testing.assert_allclose(np.asarray(out), np.asarray(ref),
                                       rtol=tol, atol=tol)

    print("KERNEL_OK")
</pallas_src>

<mosaic_0001>
module attributes {stable_mosaic.version = 11 : i64} {
  func.func @_sp_galerkin_kernel(%arg0: i32, %arg1: memref<1x64x128xf32, #tpu.memory_space<vmem>>, %arg2: memref<1x64x128xf32, #tpu.memory_space<vmem>>, %arg3: memref<1x64x128xf32, #tpu.memory_space<vmem>>, %arg4: memref<1x64x2xf32, #tpu.memory_space<vmem>>, %arg5: memref<128x128xf32, #tpu.memory_space<vmem>>, %arg6: memref<128x128xf32, #tpu.memory_space<vmem>>, %arg7: memref<128x128xf32, #tpu.memory_space<vmem>>, %arg8: memref<8x128xf32, #tpu.memory_space<vmem>>, %arg9: memref<128x128xf32, #tpu.memory_space<vmem>>, %arg10: memref<128x128xf32, #tpu.memory_space<vmem>>, %arg11: memref<128x8xf32, #tpu.memory_space<vmem>>, %arg12: memref<128x128xf32, #tpu.memory_space<vmem>>, %arg13: memref<8x128xf32, #tpu.memory_space<vmem>>, %arg14: memref<2x128xf32, #tpu.memory_space<vmem>>, %arg15: memref<1x64x128xf32, #tpu.memory_space<vmem>>) attributes {dimension_semantics = [#tpu.dimension_semantics<parallel>], iteration_bounds = array<i64: 2>, scalar_prefetch = 0 : i64, scratch_operands = 0 : i64, tpu.core_type = #tpu.core_type<tc>, window_params = [{transform_indices = @transform_0, window_bounds = array<i64: 1, 64, 128>}, {transform_indices = @transform_1, window_bounds = array<i64: 1, 64, 128>}, {transform_indices = @transform_2, window_bounds = array<i64: 1, 64, 128>}, {transform_indices = @transform_3, window_bounds = array<i64: 1, 64, 2>}, {pipeline_mode = #tpu.pipeline_mode<synchronous>, transform_indices = @transform_4, window_bounds = array<i64: 128, 128>}, {pipeline_mode = #tpu.pipeline_mode<synchronous>, transform_indices = @transform_5, window_bounds = array<i64: 128, 128>}, {pipeline_mode = #tpu.pipeline_mode<synchronous>, transform_indices = @transform_6, window_bounds = array<i64: 128, 128>}, {pipeline_mode = #tpu.pipeline_mode<synchronous>, transform_indices = @transform_7, window_bounds = array<i64: 8, 128>}, {pipeline_mode = #tpu.pipeline_mode<synchronous>, transform_indices = @transform_8, window_bounds = array<i64: 128, 128>}, {pipeline_mode = #tpu.pipeline_mode<synchronous>, transform_indices = @transform_9, window_bounds = array<i64: 128, 128>}, {pipeline_mode = #tpu.pipeline_mode<synchronous>, transform_indices = @transform_10, window_bounds = array<i64: 128, 8>}, {pipeline_mode = #tpu.pipeline_mode<synchronous>, transform_indices = @transform_11, window_bounds = array<i64: 128, 128>}, {pipeline_mode = #tpu.pipeline_mode<synchronous>, transform_indices = @transform_12, window_bounds = array<i64: 8, 128>}, {pipeline_mode = #tpu.pipeline_mode<synchronous>, transform_indices = @transform_13, window_bounds = array<i64: 2, 128>}, {transform_indices = @transform_14, window_bounds = array<i64: 1, 64, 128>}]} {
    %c0 = arith.constant 0 : index
    %c0_0 = arith.constant 0 : index
    %c0_1 = arith.constant 0 : index
    %0 = vector.load %arg1[%c0, %c0_0, %c0_1] : memref<1x64x128xf32, #tpu.memory_space<vmem>>, vector<1x64x128xf32>
    %1 = vector.shape_cast %0 : vector<1x64x128xf32> to vector<64x128xf32>
    %c0_2 = arith.constant 0 : index
    %c0_3 = arith.constant 0 : index
    %c0_4 = arith.constant 0 : index
    %2 = vector.load %arg2[%c0_2, %c0_3, %c0_4] : memref<1x64x128xf32, #tpu.memory_space<vmem>>, vector<1x64x128xf32>
    %3 = vector.shape_cast %2 : vector<1x64x128xf32> to vector<64x128xf32>
    %c0_5 = arith.constant 0 : index
    %c0_6 = arith.constant 0 : index
    %c0_7 = arith.constant 0 : index
    %4 = vector.load %arg3[%c0_5, %c0_6, %c0_7] : memref<1x64x128xf32, #tpu.memory_space<vmem>>, vector<1x64x128xf32>
    %5 = vector.shape_cast %4 : vector<1x64x128xf32> to vector<64x128xf32>
    %c0_8 = arith.constant 0 : index
    %c0_9 = arith.constant 0 : index
    %c0_10 = arith.constant 0 : index
    %6 = vector.load %arg4[%c0_8, %c0_9, %c0_10] : memref<1x64x2xf32, #tpu.memory_space<vmem>>, vector<1x64x2xf32>
    %c0_11 = arith.constant 0 : index
    %c0_12 = arith.constant 0 : index
    %7 = vector.load %arg8[%c0_11, %c0_12] : memref<8x128xf32, #tpu.memory_space<vmem>>, vector<8x128xf32>
    %8 = vector.extract_strided_slice %7 {offsets = [0, 0], sizes = [1, 128], strides = [1, 1]} : vector<8x128xf32> to vector<1x128xf32>
    %9 = vector.extract_strided_slice %7 {offsets = [1, 0], sizes = [1, 128], strides = [1, 1]} : vector<8x128xf32> to vector<1x128xf32>
    %10 = vector.extract_strided_slice %7 {offsets = [2, 0], sizes = [1, 128], strides = [1, 1]} : vector<8x128xf32> to vector<1x128xf32>
    %11 = vector.extract_strided_slice %7 {offsets = [3, 0], sizes = [1, 128], strides = [1, 1]} : vector<8x128xf32> to vector<1x128xf32>
    %12 = vector.extract_strided_slice %7 {offsets = [4, 0], sizes = [1, 128], strides = [1, 1]} : vector<8x128xf32> to vector<1x128xf32>
    %13 = vector.extract_strided_slice %7 {offsets = [5, 0], sizes = [1, 128], strides = [1, 1]} : vector<8x128xf32> to vector<1x128xf32>
    %14 = vector.extract_strided_slice %7 {offsets = [6, 0], sizes = [1, 128], strides = [1, 1]} : vector<8x128xf32> to vector<1x128xf32>
    %15 = vector.extract_strided_slice %7 {offsets = [7, 0], sizes = [1, 128], strides = [1, 1]} : vector<8x128xf32> to vector<1x128xf32>
    %c0_13 = arith.constant 0 : index
    %c0_14 = arith.constant 0 : index
    %16 = vector.load %arg5[%c0_13, %c0_14] : memref<128x128xf32, #tpu.memory_space<vmem>>, vector<128x128xf32>
    %cst = arith.constant dense<0.000000e+00> : vector<64x128xf32>
    %17 = tpu.matmul %1, %16, %cst {dimension_numbers = #tpu.dot_dimension_numbers<[1], [0], [0], [1], [0, 0, 1, 1], [], []>} : vector<64x128xf32>, vector<128x128xf32>, vector<64x128xf32> -> vector<64x128xf32>
    %18 = vector.broadcast %8 : vector<1x128xf32> to vector<64x128xf32>
    %19 = arith.addf %17, %18 : vector<64x128xf32>
    %c0_15 = arith.constant 0 : index
    %c0_16 = arith.constant 0 : index
    %20 = vector.load %arg6[%c0_15, %c0_16] : memref<128x128xf32, #tpu.memory_space<vmem>>, vector<128x128xf32>
    %cst_17 = arith.constant dense<0.000000e+00> : vector<64x128xf32>
    %21 = tpu.matmul %3, %20, %cst_17 {dimension_numbers = #tpu.dot_dimension_numbers<[1], [0], [0], [1], [0, 0, 1, 1], [], []>} : vector<64x128xf32>, vector<128x128xf32>, vector<64x128xf32> -> vector<64x128xf32>
    %22 = vector.broadcast %9 : vector<1x128xf32> to vector<64x128xf32>
    %23 = arith.addf %21, %22 : vector<64x128xf32>
    %c0_18 = arith.constant 0 : index
    %c0_19 = arith.constant 0 : index
    %24 = vector.load %arg7[%c0_18, %c0_19] : memref<128x128xf32, #tpu.memory_space<vmem>>, vector<128x128xf32>
    %cst_20 = arith.constant dense<0.000000e+00> : vector<64x128xf32>
    %25 = tpu.matmul %5, %24, %cst_20 {dimension_numbers = #tpu.dot_dimension_numbers<[1], [0], [0], [1], [0, 0, 1, 1], [], []>} : vector<64x128xf32>, vector<128x128xf32>, vector<64x128xf32> -> vector<64x128xf32>
    %26 = vector.broadcast %10 : vector<1x128xf32> to vector<64x128xf32>
    %27 = arith.addf %25, %26 : vector<64x128xf32>
    %c0_21 = arith.constant 0 : index
    %c0_22 = arith.constant 0 : index
    %28 = vector.load %arg9[%c0_21, %c0_22] : memref<128x128xf32, #tpu.memory_space<vmem>>, vector<128x128xf32>
    %29 = tpu.concatenate %23, %27 in 0 : vector<64x128xf32>, vector<64x128xf32> -> vector<128x128xf32>
    %cst_23 = arith.constant dense<0.000000e+00> : vector<128x128xf32>
    %30 = tpu.matmul %29, %28, %cst_23 {dimension_numbers = #tpu.dot_dimension_numbers<[1], [0], [0], [1], [0, 0, 1, 1], [], []>} : vector<128x128xf32>, vector<128x128xf32>, vector<128x128xf32> -> vector<128x128xf32>
    %31 = arith.subf %29, %30 : vector<128x128xf32>
    %32 = arith.mulf %31, %31 : vector<128x128xf32>
    %cst_24 = arith.constant dense<0.000000e+00> : vector<128x128xf32>
    %33 = tpu.matmul %32, %28, %cst_24 {dimension_numbers = #tpu.dot_dimension_numbers<[1], [0], [0], [1], [0, 0, 1, 1], [], []>} : vector<128x128xf32>, vector<128x128xf32>, vector<128x128xf32> -> vector<128x128xf32>
    %cst_25 = arith.constant 9.99999974E-6 : f32
    %34 = vector.broadcast %cst_25 : f32 to vector<128x128xf32>
    %35 = arith.addf %33, %34 : vector<128x128xf32>
    %36 = math.rsqrt %35 : vector<128x128xf32>
    %37 = arith.mulf %31, %36 : vector<128x128xf32>
    %38 = vector.extract_strided_slice %37 {offsets = [0, 0], sizes = [64, 128], strides = [1, 1]} : vector<128x128xf32> to vector<64x128xf32>
    %39 = vector.broadcast %11 : vector<1x128xf32> to vector<64x128xf32>
    %40 = arith.mulf %38, %39 : vector<64x128xf32>
    %41 = vector.broadcast %12 : vector<1x128xf32> to vector<64x128xf32>
    %42 = arith.addf %40, %41 : vector<64x128xf32>
    %43 = vector.extract_strided_slice %37 {offsets = [64, 0], sizes = [64, 128], strides = [1, 1]} : vector<128x128xf32> to vector<64x128xf32>
    %44 = vector.broadcast %13 : vector<1x128xf32> to vector<64x128xf32>
    %45 = arith.mulf %43, %44 : vector<64x128xf32>
    %46 = vector.broadcast %14 : vector<1x128xf32> to vector<64x128xf32>
    %47 = arith.addf %45, %46 : vector<64x128xf32>
    %48 = vector.shape_cast %19 : vector<64x128xf32> to vector<1x64x128xf32>
    %49 = vector.shape_cast %42 : vector<64x128xf32> to vector<1x64x128xf32>
    %50 = vector.shape_cast %47 : vector<64x128xf32> to vector<1x64x128xf32>
    "tpu.trace_start"() <{level = 10 : i32, message = "nsd,nse->nde"}> : () -> ()
    %cst_26 = arith.constant dense<0.000000e+00> : vector<1x128x128xf32>
    %51 = tpu.matmul %49, %50, %cst_26 {dimension_numbers = #tpu.dot_dimension_numbers<[1], [1], [2], [2], [0, 0, 0, 2, 1, 2], [0], [0]>} : vector<1x64x128xf32>, vector<1x64x128xf32>, vector<1x128x128xf32> -> vector<1x128x128xf32>
    "tpu.trace_stop"() : () -> ()
    %c0_27 = arith.constant 0 : index
    %c0_28 = arith.constant 0 : index
    %52 = vector.load %arg10[%c0_27, %c0_28] : memref<128x128xf32, #tpu.memory_space<vmem>>, vector<128x128xf32>
    %53 = vector.shape_cast %52 : vector<128x128xf32> to vector<1x128x128xf32>
    %54 = arith.mulf %51, %53 : vector<1x128x128xf32>
    "tpu.trace_start"() <{level = 10 : i32, message = "nsp,nsd->npd"}> : () -> ()
    %cst_29 = arith.constant dense<0.000000e+00> : vector<1x2x128xf32>
    %55 = tpu.matmul %6, %50, %cst_29 {dimension_numbers = #tpu.dot_dimension_numbers<[1], [1], [2], [2], [0, 0, 0, 2, 1, 2], [0], [0]>} : vector<1x64x2xf32>, vector<1x64x128xf32>, vector<1x2x128xf32> -> vector<1x2x128xf32>
    "tpu.trace_stop"() : () -> ()
    "tpu.trace_start"() <{level = 10 : i32, message = "nsd,nsp->ndp"}> : () -> ()
    %cst_30 = arith.constant dense<0.000000e+00> : vector<1x128x2xf32>
    %56 = tpu.matmul %49, %6, %cst_30 {dimension_numbers = #tpu.dot_dimension_numbers<[1], [1], [2], [2], [0, 0, 0, 2, 1, 2], [0], [0]>} : vector<1x64x128xf32>, vector<1x64x2xf32>, vector<1x128x2xf32> -> vector<1x128x2xf32>
    "tpu.trace_stop"() : () -> ()
    "tpu.trace_start"() <{level = 10 : i32, message = "nsp,nsq->npq"}> : () -> ()
    %cst_31 = arith.constant dense<0.000000e+00> : vector<1x2x2xf32>
    %57 = tpu.matmul %6, %6, %cst_31 {dimension_numbers = #tpu.dot_dimension_numbers<[1], [1], [2], [2], [0, 0, 0, 2, 1, 2], [0], [0]>} : vector<1x64x2xf32>, vector<1x64x2xf32>, vector<1x2x2xf32> -> vector<1x2x2xf32>
    "tpu.trace_stop"() : () -> ()
    %58 = tpu.concatenate %56, %56, %56, %56 in 2 : vector<1x128x2xf32>, vector<1x128x2xf32>, vector<1x128x2xf32>, vector<1x128x2xf32> -> vector<1x128x8xf32>
    %c0_32 = arith.constant 0 : index
    %c0_33 = arith.constant 0 : index
    %59 = vector.load %arg11[%c0_32, %c0_33] : memref<128x8xf32, #tpu.memory_space<vmem>>, vector<128x8xf32>
    %60 = vector.shape_cast %59 : vector<128x8xf32> to vector<1x128x8xf32>
    %61 = arith.mulf %58, %60 : vector<1x128x8xf32>
    %c0_34 = arith.constant 0 : index
    %c0_35 = arith.constant 0 : index
    %62 = vector.load %arg12[%c0_34, %c0_35] : memref<128x128xf32, #tpu.memory_space<vmem>>, vector<128x128xf32>
    %c0_36 = arith.constant 0 : index
    %c0_37 = arith.constant 0 : index
    %63 = vector.load %arg13[%c0_36, %c0_37] : memref<8x128xf32, #tpu.memory_space<vmem>>, vector<8x128xf32>
    %c0_38 = arith.constant 0 : index
    %c0_39 = arith.constant 0 : index
    %64 = vector.load %arg14[%c0_38, %c0_39] : memref<2x128xf32, #tpu.memory_space<vmem>>, vector<2x128xf32>
    "tpu.trace_start"() <{level = 10 : i32, message = "nsd,nde->nse"}> : () -> ()
    %cst_40 = arith.constant dense<0.000000e+00> : vector<1x64x128xf32>
    %65 = tpu.matmul %48, %54, %cst_40 {dimension_numbers = #tpu.dot_dimension_numbers<[2], [1], [1], [2], [0, 0, 0, 1, 1, 2], [0], [0]>} : vector<1x64x128xf32>, vector<1x128x128xf32>, vector<1x64x128xf32> -> vector<1x64x128xf32>
    "tpu.trace_stop"() : () -> ()
    %66 = vector.extract_strided_slice %6 {offsets = [0, 0, 0], sizes = [1, 64, 1], strides = [1, 1, 1]} : vector<1x64x2xf32> to vector<1x64x1xf32>
    %67 = vector.extract_strided_slice %55 {offsets = [0, 0, 0], sizes = [1, 1, 128], strides = [1, 1, 1]} : vector<1x2x128xf32> to vector<1x1x128xf32>
    %68 = vector.broadcast %66 : vector<1x64x1xf32> to vector<1x64x128xf32>
    %69 = vector.broadcast %67 : vector<1x1x128xf32> to vector<1x64x128xf32>
    %70 = arith.mulf %68, %69 : vector<1x64x128xf32>
    %71 = vector.extract_strided_slice %6 {offsets = [0, 0, 1], sizes = [1, 64, 1], strides = [1, 1, 1]} : vector<1x64x2xf32> to vector<1x64x1xf32>
    %72 = vector.extract_strided_slice %55 {offsets = [0, 1, 0], sizes = [1, 1, 128], strides = [1, 1, 1]} : vector<1x2x128xf32> to vector<1x1x128xf32>
    %73 = vector.broadcast %71 : vector<1x64x1xf32> to vector<1x64x128xf32>
    %74 = vector.broadcast %72 : vector<1x1x128xf32> to vector<1x64x128xf32>
    %75 = arith.mulf %73, %74 : vector<1x64x128xf32>
    %76 = arith.addf %70, %75 : vector<1x64x128xf32>
    %cst_41 = arith.constant 1.562500e-02 : f32
    %77 = vector.broadcast %cst_41 : f32 to vector<1x64x128xf32>
    %78 = arith.mulf %76, %77 : vector<1x64x128xf32>
    %79 = arith.addf %65, %78 : vector<1x64x128xf32>
    "tpu.trace_start"() <{level = 10 : i32, message = "nsd,ndp->nsp"}> : () -> ()
    %cst_42 = arith.constant dense<0.000000e+00> : vector<1x64x8xf32>
    %80 = tpu.matmul %48, %61, %cst_42 {dimension_numbers = #tpu.dot_dimension_numbers<[2], [1], [1], [2], [0, 0, 0, 1, 1, 2], [0], [0]>} : vector<1x64x128xf32>, vector<1x128x8xf32>, vector<1x64x8xf32> -> vector<1x64x8xf32>
    "tpu.trace_stop"() : () -> ()
    %81 = vector.extract_strided_slice %6 {offsets = [0, 0, 0], sizes = [1, 64, 1], strides = [1, 1, 1]} : vector<1x64x2xf32> to vector<1x64x1xf32>
    %82 = vector.extract_strided_slice %57 {offsets = [0, 0, 0], sizes = [1, 1, 2], strides = [1, 1, 1]} : vector<1x2x2xf32> to vector<1x1x2xf32>
    %83 = vector.broadcast %81 : vector<1x64x1xf32> to vector<1x64x2xf32>
    %84 = vector.broadcast %82 : vector<1x1x2xf32> to vector<1x64x2xf32>
    %85 = arith.mulf %83, %84 : vector<1x64x2xf32>
    %86 = vector.extract_strided_slice %6 {offsets = [0, 0, 1], sizes = [1, 64, 1], strides = [1, 1, 1]} : vector<1x64x2xf32> to vector<1x64x1xf32>
    %87 = vector.extract_strided_slice %57 {offsets = [0, 1, 0], sizes = [1, 1, 2], strides = [1, 1, 1]} : vector<1x2x2xf32> to vector<1x1x2xf32>
    %88 = vector.broadcast %86 : vector<1x64x1xf32> to vector<1x64x2xf32>
    %89 = vector.broadcast %87 : vector<1x1x2xf32> to vector<1x64x2xf32>
    %90 = arith.mulf %88, %89 : vector<1x64x2xf32>
    %91 = arith.addf %85, %90 : vector<1x64x2xf32>
    %cst_43 = arith.constant 1.562500e-02 : f32
    %92 = vector.broadcast %cst_43 : f32 to vector<1x64x2xf32>
    %93 = arith.mulf %91, %92 : vector<1x64x2xf32>
    %94 = vector.shape_cast %79 : vector<1x64x128xf32> to vector<64x128xf32>
    %cst_44 = arith.constant dense<0.000000e+00> : vector<64x128xf32>
    %95 = tpu.matmul %94, %62, %cst_44 {dimension_numbers = #tpu.dot_dimension_numbers<[1], [0], [0], [1], [0, 0, 1, 1], [], []>} : vector<64x128xf32>, vector<128x128xf32>, vector<64x128xf32> -> vector<64x128xf32>
    %96 = vector.shape_cast %80 : vector<1x64x8xf32> to vector<64x8xf32>
    %cst_45 = arith.constant dense<0.000000e+00> : vector<64x128xf32>
    %97 = tpu.matmul %96, %63, %cst_45 {dimension_numbers = #tpu.dot_dimension_numbers<[1], [0], [0], [1], [0, 0, 1, 1], [], []>} : vector<64x8xf32>, vector<8x128xf32>, vector<64x128xf32> -> vector<64x128xf32>
    %98 = arith.addf %95, %97 : vector<64x128xf32>
    %99 = vector.shape_cast %93 : vector<1x64x2xf32> to vector<64x2xf32>
    %cst_46 = arith.constant dense<0.000000e+00> : vector<64x128xf32>
    %100 = tpu.matmul %99, %64, %cst_46 {dimension_numbers = #tpu.dot_dimension_numbers<[1], [0], [0], [1], [0, 0, 1, 1], [], []>} : vector<64x2xf32>, vector<2x128xf32>, vector<64x128xf32> -> vector<64x128xf32>
    %101 = arith.addf %98, %100 : vector<64x128xf32>
    %102 = vector.broadcast %15 : vector<1x128xf32> to vector<64x128xf32>
    %103 = arith.addf %101, %102 : vector<64x128xf32>
    %104 = vector.shape_cast %103 : vector<64x128xf32> to vector<1x64x128xf32>
    %c0_47 = arith.constant 0 : index
    %c0_48 = arith.constant 0 : index
    %c0_49 = arith.constant 0 : index
    %105 = vector.load %arg15[%c0_47, %c0_48, %c0_49] : memref<1x64x128xf32, #tpu.memory_space<vmem>>, vector<1x64x128xf32>
    tpu.vector_store %arg15[%c0_47, %c0_48, %c0_49], %104 {strides = array<i32>} : memref<1x64x128xf32, #tpu.memory_space<vmem>>, vector<1x64x128xf32>,
    return
  }
  func.func @transform_0(%arg0: i32) -> (i32, i32, i32) {
    %c0_i32 = arith.constant 0 : i32
    %c0_i32_0 = arith.constant 0 : i32
    %c0_i32_1 = arith.constant 0 : i32
    return %arg0, %c0_i32, %c0_i32_0 : i32, i32, i32
  }
  func.func @transform_1(%arg0: i32) -> (i32, i32, i32) {
    %c0_i32 = arith.constant 0 : i32
    %c0_i32_0 = arith.constant 0 : i32
    %c0_i32_1 = arith.constant 0 : i32
    return %arg0, %c0_i32, %c0_i32_0 : i32, i32, i32
  }
  func.func @transform_2(%arg0: i32) -> (i32, i32, i32) {
    %c0_i32 = arith.constant 0 : i32
    %c0_i32_0 = arith.constant 0 : i32
    %c0_i32_1 = arith.constant 0 : i32
    return %arg0, %c0_i32, %c0_i32_0 : i32, i32, i32
  }
  func.func @transform_3(%arg0: i32) -> (i32, i32, i32) {
    %c0_i32 = arith.constant 0 : i32
    %c0_i32_0 = arith.constant 0 : i32
    %c0_i32_1 = arith.constant 0 : i32
    return %arg0, %c0_i32, %c0_i32_0 : i32, i32, i32
  }
  func.func @transform_4(%arg0: i32) -> (i32, i32) {
    %c0_i32 = arith.constant 0 : i32
    %c0_i32_0 = arith.constant 0 : i32
    %c0_i32_1 = arith.constant 0 : i32
    return %c0_i32, %c0_i32_0 : i32, i32
  }
  func.func @transform_5(%arg0: i32) -> (i32, i32) {
    %c0_i32 = arith.constant 0 : i32
    %c0_i32_0 = arith.constant 0 : i32
    %c0_i32_1 = arith.constant 0 : i32
    return %c0_i32, %c0_i32_0 : i32, i32
  }
  func.func @transform_6(%arg0: i32) -> (i32, i32) {
    %c0_i32 = arith.constant 0 : i32
    %c0_i32_0 = arith.constant 0 : i32
    %c0_i32_1 = arith.constant 0 : i32
    return %c0_i32, %c0_i32_0 : i32, i32
  }
  func.func @transform_7(%arg0: i32) -> (i32, i32) {
    %c0_i32 = arith.constant 0 : i32
    %c0_i32_0 = arith.constant 0 : i32
    %c0_i32_1 = arith.constant 0 : i32
    return %c0_i32, %c0_i32_0 : i32, i32
  }
  func.func @transform_8(%arg0: i32) -> (i32, i32) {
    %c0_i32 = arith.constant 0 : i32
    %c0_i32_0 = arith.constant 0 : i32
    %c0_i32_1 = arith.constant 0 : i32
    return %c0_i32, %c0_i32_0 : i32, i32
  }
  func.func @transform_9(%arg0: i32) -> (i32, i32) {
    %c0_i32 = arith.constant 0 : i32
    %c0_i32_0 = arith.constant 0 : i32
    %c0_i32_1 = arith.constant 0 : i32
    return %c0_i32, %c0_i32_0 : i32, i32
  }
  func.func @transform_10(%arg0: i32) -> (i32, i32) {
    %c0_i32 = arith.constant 0 : i32
    %c0_i32_0 = arith.constant 0 : i32
    %c0_i32_1 = arith.constant 0 : i32
    return %c0_i32, %c0_i32_0 : i32, i32
  }
  func.func @transform_11(%arg0: i32) -> (i32, i32) {
    %c0_i32 = arith.constant 0 : i32
    %c0_i32_0 = arith.constant 0 : i32
    %c0_i32_1 = arith.constant 0 : i32
    return %c0_i32, %c0_i32_0 : i32, i32
  }
  func.func @transform_12(%arg0: i32) -> (i32, i32) {
    %c0_i32 = arith.constant 0 : i32
    %c0_i32_0 = arith.constant 0 : i32
    %c0_i32_1 = arith.constant 0 : i32
    return %c0_i32, %c0_i32_0 : i32, i32
  }
  func.func @transform_13(%arg0: i32) -> (i32, i32) {
    %c0_i32 = arith.constant 0 : i32
    %c0_i32_0 = arith.constant 0 : i32
    %c0_i32_1 = arith.constant 0 : i32
    return %c0_i32, %c0_i32_0 : i32, i32
  }
  func.func @transform_14(%arg0: i32) -> (i32, i32, i32) {
    %c0_i32 = arith.constant 0 : i32
    %c0_i32_0 = arith.constant 0 : i32
    %c0_i32_1 = arith.constant 0 : i32
    return %arg0, %c0_i32, %c0_i32_0 : i32, i32, i32
  }
}

</mosaic_0001>

<llo_original>
// kernel: tpu_custom_call.1
$region0: #{tpu_custom_call.1}
  #allocation0 [shape = 'u32[]', space=smem, size = 0x4, offset = 0x4, fixed_abs, tag = 'smem constant byte address 0x4 - core index']
  #allocation1 [shape = 'u32[72,128]{1,0:T(1,128)}', space=vmem, size = 0x9000, scoped, tag = 'internal scratch']
  %s0 = inlined_call_operand.vmem [shape: f32[2,64,128], index: 0, kind: input, shape index: {}]
  %s1 = inlined_call_operand.vmem [shape: f32[2,64,128], index: 1, kind: input, shape index: {}]
  %s2 = inlined_call_operand.hbm [shape: f32[2,64,128], index: 2, kind: input, shape index: {}]
  %s3 = inlined_call_operand.vmem [shape: f32[2,64,2], index: 3, kind: input, shape index: {}]
  %s4 = inlined_call_operand.hbm [shape: f32[128,128], index: 4, kind: input, shape index: {}]
  %s5 = inlined_call_operand.hbm [shape: f32[128,128], index: 5, kind: input, shape index: {}]
  %s6 = inlined_call_operand.hbm [shape: f32[128,128], index: 6, kind: input, shape index: {}]
  %s7 = inlined_call_operand.vmem [shape: f32[8,128], index: 7, kind: input, shape index: {}]
  %s8 = inlined_call_operand.hbm [shape: f32[128,128], index: 8, kind: input, shape index: {}]
  %s9 = inlined_call_operand.hbm [shape: f32[128,128], index: 9, kind: input, shape index: {}]
  %s10 = inlined_call_operand.vmem [shape: f32[128,8], index: 10, kind: input, shape index: {}]
  %s11 = inlined_call_operand.hbm [shape: f32[128,128], index: 11, kind: input, shape index: {}]
  %s12 = inlined_call_operand.hbm [shape: f32[8,128], index: 12, kind: input, shape index: {}]
  %s13 = inlined_call_operand.vmem [shape: f32[2,128], index: 13, kind: input, shape index: {}]
  %s14 = inlined_call_operand.hbm [shape: f32[2,64,128], index: 14, kind: output, shape index: {}]
  %s15 = sld [smem:[#allocation0]]
  $region121: #{tpu_custom_call.1} parent=0
    _
  %s17 = ssub.s32 1, %s15
  %s18 = scalar_select 0, %s17, %s15
  $region1: #{tpu_custom_call.1} parent=0
    #allocation2 [shape = 'u8[65536]{0}', space=vmem, size = 0x10000, scoped, tag = 'input window, operand 2']
    #allocation3 [shape = 's32[2]{0}', space=sflag, size = 0x8, scoped, tag = 'scoped memory for tpu_custom_call.1']
    #allocation4 [shape = 's32[2]{0}', space=sflag, size = 0x8, scoped, tag = 'scoped memory for tpu_custom_call.1']
    #allocation5 [shape = 'u8[65536]{0}', space=vmem, size = 0x10000, scoped, tag = 'input window, operand 4, single buffered']
    #allocation6 [shape = 's32[1]{0}', space=sflag, size = 0x4, scoped, tag = 'scoped memory for tpu_custom_call.1']
    #allocation7 [shape = 'u8[65536]{0}', space=vmem, size = 0x10000, scoped, tag = 'input window, operand 5, single buffered']
    #allocation8 [shape = 'u8[65536]{0}', space=vmem, size = 0x10000, scoped, tag = 'input window, operand 6, single buffered']
    #allocation9 [shape = 's32[1]{0}', space=sflag, size = 0x4, scoped, tag = 'scoped memory for tpu_custom_call.1']
    #allocation10 [shape = 'u8[65536]{0}', space=vmem, size = 0x10000, scoped, tag = 'input window, operand 8, single buffered']
    #allocation11 [shape = 'u8[65536]{0}', space=vmem, size = 0x10000, scoped, tag = 'input window, operand 9, single buffered']
    #allocation12 [shape = 's32[1]{0}', space=sflag, size = 0x4, scoped, tag = 'scoped memory for tpu_custom_call.1']
    #allocation13 [shape = 'u8[65536]{0}', space=vmem, size = 0x10000, scoped, tag = 'input window, operand 11, single buffered']
    #allocation14 [shape = 'u8[4096]{0}', space=vmem, size = 0x1000, scoped, tag = 'input window, operand 12, single buffered']
    #allocation15 [shape = 's32[1]{0}', space=sflag, size = 0x4, scoped, tag = 'scoped memory for tpu_custom_call.1']
    #allocation16 [shape = 'u8[65536]{0}', space=vmem, size = 0x10000, scoped, tag = 'output window, operand 0']
    %19 = vsyncpa [#allocation3], 0
    %s20 = scalar_lea.sflag [#allocation3], 1
    %21 = vsyncpa %s20, 0
    %22 = vsyncpa [#allocation6], 0
    %23 = vsyncpa [#allocation9], 0
    %24 = vsyncpa [#allocation12], 0
    %25 = vsyncpa [#allocation15], 0
    %26 = vsyncpa [#allocation4], 0
    %s27 = scalar_lea.sflag [#allocation4], 1
    %28 = vsyncpa %s27, 0
    loop: start=0, step=1, limit=4
    $region2: #{tpu_custom_call.1} parent=1 // loop_pre_header
      _
    $region3: #{tpu_custom_call.1} parent=1 // loop_header
      %s30 = sphi 0, %s34
      %p31 = scmp.ge.s32.totalorder %s30, 4
      %s40 = sphi 0, %s42
      %s43 = sphi 0, %s40
      %s44 = sphi 0, %s43
      %s60 = sphi 0, %s44
      %s66 = sphi 0, %s68
      %s69 = sphi 0, %s66
      %s70 = sphi 0, %s69
      %s86 = sphi 0, %s70
      %s92 = sphi 0, %s94
      %s95 = sphi 0, %s92
      %s96 = sphi 0, %s95
      %s112 = sphi 0, %s96
      %s118 = sphi 0, %s120
      %s121 = sphi 0, %s118
      %s122 = sphi 0, %s121
      %s138 = sphi 0, %s122
      %s142 = sphi 0, %s142
      %s144 = sphi 0, %s142
      %s145 = sphi 0, %s144
      %s159 = sphi 0, %s145
      %s163 = sphi 0, %s163
      %s165 = sphi 0, %s163
      %s166 = sphi 0, %s165
      %s180 = sphi 0, %s166
      %s184 = sphi 0, %s184
      %s186 = sphi 0, %s184
      %s187 = sphi 0, %s186
      %s201 = sphi 0, %s187
      %s205 = sphi 0, %s205
      %s207 = sphi 0, %s205
      %s208 = sphi 0, %s207
      %s222 = sphi 0, %s208
      %s226 = sphi 0, %s226
      %s228 = sphi 0, %s226
      %s229 = sphi 0, %s228
      %s243 = sphi 0, %s229
      %s247 = sphi 0, %s247
      %s249 = sphi 0, %s247
      %s250 = sphi 0, %s249
      %s264 = sphi 0, %s250
      %s268 = sphi 0, %s268
      %s270 = sphi 0, %s268
      %s271 = sphi 0, %s270
      %s285 = sphi 0, %s271
      %s289 = sphi 0, %s289
      %s291 = sphi 0, %s289
      %s292 = sphi 0, %s291
      %s306 = sphi 0, %s292
      %s310 = sphi 0, %s310
      %s312 = sphi 0, %s310
      %s313 = sphi 0, %s312
      %s327 = sphi 0, %s313
      %s331 = sphi 0, %s331
      %s333 = sphi 0, %s331
      %s334 = sphi 0, %s333
      %s348 = sphi 0, %s334
      %s354 = sphi 0, %s356
      %s357 = sphi 0, %s354
      %s358 = sphi 0, %s357
      %s374 = sphi 0, %s358
    $region4: #{tpu_custom_call.1} parent=1 // loop_header_branch
      %33 = sbr.rel (%p31) target = $region8
    $region5: #{tpu_custom_call.1} parent=1 // loop_body
      %s35 = ssub.s32 %s30, 1
      %s36 = ssub.s32 %s30, 2
      %s37 = sadd.s32 %s30, 1
      %s38 = ssub.s32 %s30, %s37
      %p39 = scmp.eq.s32.totalorder %s38, 0
      %s41 = sadd.s32 %s40, 1
      %s42 = scalar_select %p39, %s40, %s41
      %p45 = pneg %p39
      %p46 = scmp.eq.s32.totalorder %s30, 1
      %p47 = por %p45, %p46
      %p48 = scmp.ne.s32.totalorder %s40, %s43
      %p49 = scmp.eq.s32.totalorder %s30, 0
      %p50 = por %p48, %p49
      %p51 = scmp.ne.s32.totalorder %s40, %s43
      %p52 = scmp.eq.s32.totalorder %s35, 1
      %p53 = por %p51, %p52
      %p54 = scmp.ne.s32.totalorder %s43, %s44
      %p55 = scmp.eq.s32.totalorder %s35, 0
      %p56 = por %p54, %p55
      %p57 = scmp.ne.s32.totalorder %s43, %s44
      %p58 = scmp.eq.s32.totalorder %s36, 1
      %p59 = por %p57, %p58
      %p61 = scmp.ne.s32.totalorder %s44, %s60
      %p62 = scmp.eq.s32.totalorder %s36, 0
      %p63 = por %p61, %p62
      %s64 = ssub.s32 %s30, %s37
      %p65 = scmp.eq.s32.totalorder %s64, 0
      %s67 = sadd.s32 %s66, 1
      %s68 = scalar_select %p65, %s66, %s67
      %p71 = pneg %p65
      %p72 = scmp.eq.s32.totalorder %s30, 1
      %p73 = por %p71, %p72
      %p74 = scmp.ne.s32.totalorder %s66, %s69
      %p75 = scmp.eq.s32.totalorder %s30, 0
      %p76 = por %p74, %p75
      %p77 = scmp.ne.s32.totalorder %s66, %s69
      %p78 = scmp.eq.s32.totalorder %s35, 1
      %p79 = por %p77, %p78
      %p80 = scmp.ne.s32.totalorder %s69, %s70
      %p81 = scmp.eq.s32.totalorder %s35, 0
      %p82 = por %p80, %p81
      %p83 = scmp.ne.s32.totalorder %s69, %s70
      %p84 = scmp.eq.s32.totalorder %s36, 1
      %p85 = por %p83, %p84
      %p87 = scmp.ne.s32.totalorder %s70, %s86
      %p88 = scmp.eq.s32.totalorder %s36, 0
      %p89 = por %p87, %p88
      %s90 = ssub.s32 %s30, %s37
      %p91 = scmp.eq.s32.totalorder %s90, 0
      %s93 = sadd.s32 %s92, 1
      %s94 = scalar_select %p91, %s92, %s93
      %p97 = pneg %p91
      %p98 = scmp.eq.s32.totalorder %s30, 1
      %p99 = por %p97, %p98
      %p100 = scmp.ne.s32.totalorder %s92, %s95
      %p101 = scmp.eq.s32.totalorder %s30, 0
      %p102 = por %p100, %p101
      %p103 = scmp.ne.s32.totalorder %s92, %s95
      %p104 = scmp.eq.s32.totalorder %s35, 1
      %p105 = por %p103, %p104
      %p106 = scmp.ne.s32.totalorder %s95, %s96
      %p107 = scmp.eq.s32.totalorder %s35, 0
      %p108 = por %p106, %p107
      %p109 = scmp.ne.s32.totalorder %s95, %s96
      %p110 = scmp.eq.s32.totalorder %s36, 1
      %p111 = por %p109, %p110
      %p113 = scmp.ne.s32.totalorder %s96, %s112
      %p114 = scmp.eq.s32.totalorder %s36, 0
      %p115 = por %p113, %p114
      %s116 = ssub.s32 %s30, %s37
      %p117 = scmp.eq.s32.totalorder %s116, 0
      %s119 = sadd.s32 %s118, 1
      %s120 = scalar_select %p117, %s118, %s119
      %p123 = pneg %p117
      %p124 = scmp.eq.s32.totalorder %s30, 1
      %p125 = por %p123, %p124
      %p126 = scmp.ne.s32.totalorder %s118, %s121
      %p127 = scmp.eq.s32.totalorder %s30, 0
      %p128 = por %p126, %p127
      %p129 = scmp.ne.s32.totalorder %s118, %s121
      %p130 = scmp.eq.s32.totalorder %s35, 1
      %p131 = por %p129, %p130
      %p132 = scmp.ne.s32.totalorder %s121, %s122
      %p133 = scmp.eq.s32.totalorder %s35, 0
      %p134 = por %p132, %p133
      %p135 = scmp.ne.s32.totalorder %s121, %s122
      %p136 = scmp.eq.s32.totalorder %s36, 1
      %p137 = por %p135, %p136
      %p139 = scmp.ne.s32.totalorder %s122, %s138
      %p140 = scmp.eq.s32.totalorder %s36, 0
      %p141 = por %p139, %p140
      %s143 = sadd.s32 %s142, 1
      %p146 = scmp.eq.s32.totalorder %s30, 1
      %p147 = scmp.ne.s32.totalorder %s142, %s144
      %p148 = scmp.eq.s32.totalorder %s30, 0
      %p149 = por %p147, %p148
      %p150 = scmp.ne.s32.totalorder %s142, %s144
      %p151 = scmp.eq.s32.totalorder %s35, 1
      %p152 = por %p150, %p151
      %p153 = scmp.ne.s32.totalorder %s144, %s145
      %p154 = scmp.eq.s32.totalorder %s35, 0
      %p155 = por %p153, %p154
      %p156 = scmp.ne.s32.totalorder %s144, %s145
      %p157 = scmp.eq.s32.totalorder %s36, 1
      %p158 = por %p156, %p157
      %p160 = scmp.ne.s32.totalorder %s145, %s159
      %p161 = scmp.eq.s32.totalorder %s36, 0
      %p162 = por %p160, %p161
      %s164 = sadd.s32 %s163, 1
      %p167 = scmp.eq.s32.totalorder %s30, 1
      %p168 = scmp.ne.s32.totalorder %s163, %s165
      %p169 = scmp.eq.s32.totalorder %s30, 0
      %p170 = por %p168, %p169
      %p171 = scmp.ne.s32.totalorder %s163, %s165
      %p172 = scmp.eq.s32.totalorder %s35, 1
      %p173 = por %p171, %p172
      %p174 = scmp.ne.s32.totalorder %s165, %s166
      %p175 = scmp.eq.s32.totalorder %s35, 0
      %p176 = por %p174, %p175
      %p177 = scmp.ne.s32.totalorder %s165, %s166
      %p178 = scmp.eq.s32.totalorder %s36, 1
      %p179 = por %p177, %p178
      %p181 = scmp.ne.s32.totalorder %s166, %s180
      %p182 = scmp.eq.s32.totalorder %s36, 0
      %p183 = por %p181, %p182
      %s185 = sadd.s32 %s184, 1
      %p188 = scmp.eq.s32.totalorder %s30, 1
      %p189 = scmp.ne.s32.totalorder %s184, %s186
      %p190 = scmp.eq.s32.totalorder %s30, 0
      %p191 = por %p189, %p190
      %p192 = scmp.ne.s32.totalorder %s184, %s186
      %p193 = scmp.eq.s32.totalorder %s35, 1
      %p194 = por %p192, %p193
      %p195 = scmp.ne.s32.totalorder %s186, %s187
      %p196 = scmp.eq.s32.totalorder %s35, 0
      %p197 = por %p195, %p196
      %p198 = scmp.ne.s32.totalorder %s186, %s187
      %p199 = scmp.eq.s32.totalorder %s36, 1
      %p200 = por %p198, %p199
      %p202 = scmp.ne.s32.totalorder %s187, %s201
      %p203 = scmp.eq.s32.totalorder %s36, 0
      %p204 = por %p202, %p203
      %s206 = sadd.s32 %s205, 1
      %p209 = scmp.eq.s32.totalorder %s30, 1
      %p210 = scmp.ne.s32.totalorder %s205, %s207
      %p211 = scmp.eq.s32.totalorder %s30, 0
      %p212 = por %p210, %p211
      %p213 = scmp.ne.s32.totalorder %s205, %s207
      %p214 = scmp.eq.s32.totalorder %s35, 1
      %p215 = por %p213, %p214
      %p216 = scmp.ne.s32.totalorder %s207, %s208
      %p217 = scmp.eq.s32.totalorder %s35, 0
      %p218 = por %p216, %p217
      %p219 = scmp.ne.s32.totalorder %s207, %s208
      %p220 = scmp.eq.s32.totalorder %s36, 1
      %p221 = por %p219, %p220
      %p223 = scmp.ne.s32.totalorder %s208, %s222
      %p224 = scmp.eq.s32.totalorder %s36, 0
      %p225 = por %p223, %p224
      %s227 = sadd.s32 %s226, 1
      %p230 = scmp.eq.s32.totalorder %s30, 1
      %p231 = scmp.ne.s32.totalorder %s226, %s228
      %p232 = scmp.eq.s32.totalorder %s30, 0
      %p233 = por %p231, %p232
      %p234 = scmp.ne.s32.totalorder %s226, %s228
      %p235 = scmp.eq.s32.totalorder %s35, 1
      %p236 = por %p234, %p235
      %p237 = scmp.ne.s32.totalorder %s228, %s229
      %p238 = scmp.eq.s32.totalorder %s35, 0
      %p239 = por %p237, %p238
      %p240 = scmp.ne.s32.totalorder %s228, %s229
      %p241 = scmp.eq.s32.totalorder %s36, 1
      %p242 = por %p240, %p241
      %p244 = scmp.ne.s32.totalorder %s229, %s243
      %p245 = scmp.eq.s32.totalorder %s36, 0
      %p246 = por %p244, %p245
      %s248 = sadd.s32 %s247, 1
      %p251 = scmp.eq.s32.totalorder %s30, 1
      %p252 = scmp.ne.s32.totalorder %s247, %s249
      %p253 = scmp.eq.s32.totalorder %s30, 0
      %p254 = por %p252, %p253
      %p255 = scmp.ne.s32.totalorder %s247, %s249
      %p256 = scmp.eq.s32.totalorder %s35, 1
      %p257 = por %p255, %p256
      %p258 = scmp.ne.s32.totalorder %s249, %s250
      %p259 = scmp.eq.s32.totalorder %s35, 0
      %p260 = por %p258, %p259
      %p261 = scmp.ne.s32.totalorder %s249, %s250
      %p262 = scmp.eq.s32.totalorder %s36, 1
      %p263 = por %p261, %p262
      %p265 = scmp.ne.s32.totalorder %s250, %s264
      %p266 = scmp.eq.s32.totalorder %s36, 0
      %p267 = por %p265, %p266
      %s269 = sadd.s32 %s268, 1
      %p272 = scmp.eq.s32.totalorder %s30, 1
      %p273 = scmp.ne.s32.totalorder %s268, %s270
      %p274 = scmp.eq.s32.totalorder %s30, 0
      %p275 = por %p273, %p274
      %p276 = scmp.ne.s32.totalorder %s268, %s270
      %p277 = scmp.eq.s32.totalorder %s35, 1
      %p278 = por %p276, %p277
      %p279 = scmp.ne.s32.totalorder %s270, %s271
      %p280 = scmp.eq.s32.totalorder %s35, 0
      %p281 = por %p279, %p280
      %p282 = scmp.ne.s32.totalorder %s270, %s271
      %p283 = scmp.eq.s32.totalorder %s36, 1
      %p284 = por %p282, %p283
      %p286 = scmp.ne.s32.totalorder %s271, %s285
      %p287 = scmp.eq.s32.totalorder %s36, 0
      %p288 = por %p286, %p287
      %s290 = sadd.s32 %s289, 1
      %p293 = scmp.eq.s32.totalorder %s30, 1
      %p294 = scmp.ne.s32.totalorder %s289, %s291
      %p295 = scmp.eq.s32.totalorder %s30, 0
      %p296 = por %p294, %p295
      %p297 = scmp.ne.s32.totalorder %s289, %s291
      %p298 = scmp.eq.s32.totalorder %s35, 1
      %p299 = por %p297, %p298
      %p300 = scmp.ne.s32.totalorder %s291, %s292
      %p301 = scmp.eq.s32.totalorder %s35, 0
      %p302 = por %p300, %p301
      %p303 = scmp.ne.s32.totalorder %s291, %s292
      %p304 = scmp.eq.s32.totalorder %s36, 1
      %p305 = por %p303, %p304
      %p307 = scmp.ne.s32.totalorder %s292, %s306
      %p308 = scmp.eq.s32.totalorder %s36, 0
      %p309 = por %p307, %p308
      %s311 = sadd.s32 %s310, 1
      %p314 = scmp.eq.s32.totalorder %s30, 1
      %p315 = scmp.ne.s32.totalorder %s310, %s312
      %p316 = scmp.eq.s32.totalorder %s30, 0
      %p317 = por %p315, %p316
      %p318 = scmp.ne.s32.totalorder %s310, %s312
      %p319 = scmp.eq.s32.totalorder %s35, 1
      %p320 = por %p318, %p319
      %p321 = scmp.ne.s32.totalorder %s312, %s313
      %p322 = scmp.eq.s32.totalorder %s35, 0
      %p323 = por %p321, %p322
      %p324 = scmp.ne.s32.totalorder %s312, %s313
      %p325 = scmp.eq.s32.totalorder %s36, 1
      %p326 = por %p324, %p325
      %p328 = scmp.ne.s32.totalorder %s313, %s327
      %p329 = scmp.eq.s32.totalorder %s36, 0
      %p330 = por %p328, %p329
      %s332 = sadd.s32 %s331, 1
      %p335 = scmp.eq.s32.totalorder %s30, 1
      %p336 = scmp.ne.s32.totalorder %s331, %s333
      %p337 = scmp.eq.s32.totalorder %s30, 0
      %p338 = por %p336, %p337
      %p339 = scmp.ne.s32.totalorder %s331, %s333
      %p340 = scmp.eq.s32.totalorder %s35, 1
      %p341 = por %p339, %p340
      %p342 = scmp.ne.s32.totalorder %s333, %s334
      %p343 = scmp.eq.s32.totalorder %s35, 0
      %p344 = por %p342, %p343
      %p345 = scmp.ne.s32.totalorder %s333, %s334
      %p346 = scmp.eq.s32.totalorder %s36, 1
      %p347 = por %p345, %p346
      %p349 = scmp.ne.s32.totalorder %s334, %s348
      %p350 = scmp.eq.s32.totalorder %s36, 0
      %p351 = por %p349, %p350
      %s352 = ssub.s32 %s30, %s37
      %p353 = scmp.eq.s32.totalorder %s352, 0
      %s355 = sadd.s32 %s354, 1
      %s356 = scalar_select %p353, %s354, %s355
      %p359 = pneg %p353
      %p360 = scmp.eq.s32.totalorder %s30, 1
      %p361 = por %p359, %p360
      %p362 = scmp.ne.s32.totalorder %s354, %s357
      %p363 = scmp.eq.s32.totalorder %s30, 0
      %p364 = por %p362, %p363
      %p365 = scmp.ne.s32.totalorder %s354, %s357
      %p366 = scmp.eq.s32.totalorder %s35, 1
      %p367 = por %p365, %p366
      %p368 = scmp.ne.s32.totalorder %s357, %s358
      %p369 = scmp.eq.s32.totalorder %s35, 0
      %p370 = por %p368, %p369
      %p371 = scmp.ne.s32.totalorder %s357, %s358
      %p372 = scmp.eq.s32.totalorder %s36, 1
      %p373 = por %p371, %p372
      %p375 = scmp.ne.s32.totalorder %s358, %s374
      %p376 = scmp.eq.s32.totalorder %s36, 0
      %p377 = por %p375, %p376
      %p378 = scmp.le.s32.totalorder 1, %s30
      %p379 = scmp.lt.s32.totalorder %s30, 3
      %p380 = pnand %p378, %p379
      %p381 = pneg %p380
      // Predicated region
      $region9: #{tpu_custom_call.1} parent=5 // pred_check
        _
      $region10: #{tpu_custom_call.1} parent=5 // pred_check_branch
        %383 = sbr.rel (%p380) target = $region12
      $region11: #{tpu_custom_call.1} parent=5 // pred_region
        %s384 = ssub.s32 %s30, 1
        // Predicated region
        $region13: #{tpu_custom_call.1} parent=11 // pred_check
          %p385 = pneg %p155
        $region14: #{tpu_custom_call.1} parent=11 // pred_check_branch
          %387 = sbr.rel (%p385) target = $region16
        $region15: #{tpu_custom_call.1} parent=11 // pred_region
          %389 = vsyncadd [#allocation6], 0
          %s390 = sshll.u32 %s4, 4
          %s391 = int_to_ptr.hbm [resolvable:$true] %s390
          %s392 = sshll.u32 [#allocation5], 4
          %s393 = int_to_ptr.vmem [resolvable:$true] %s392
          %398 = dma.hbm_to_vmem [thread:$0]  %s391, 2048, %s393, [#allocation6], 128, 128, 8
        $region16: #{tpu_custom_call.1} parent=11 // pred_fallthru
          _
        // Predicated region
        $region17: #{tpu_custom_call.1} parent=11 // pred_check
          %p399 = pneg %p176
        $region18: #{tpu_custom_call.1} parent=11 // pred_check_branch
          %401 = sbr.rel (%p399) target = $region20
        $region19: #{tpu_custom_call.1} parent=11 // pred_region
          %403 = vsyncadd [#allocation6], 0
          %s404 = sshll.u32 %s5, 4
          %s405 = int_to_ptr.hbm [resolvable:$true] %s404
          %s406 = sshll.u32 [#allocation7], 4
          %s407 = int_to_ptr.vmem [resolvable:$true] %s406
          %412 = dma.hbm_to_vmem [thread:$0]  %s405, 2048, %s407, [#allocation6], 128, 128, 8
        $region20: #{tpu_custom_call.1} parent=11 // pred_fallthru
          _
        // Predicated region
        $region21: #{tpu_custom_call.1} parent=11 // pred_check
          %p413 = pneg %p197
        $region22: #{tpu_custom_call.1} parent=11 // pred_check_branch
          %415 = sbr.rel (%p413) target = $region24
        $region23: #{tpu_custom_call.1} parent=11 // pred_region
          %417 = vsyncadd [#allocation9], 0
          %s418 = sshll.u32 %s6, 4
          %s419 = int_to_ptr.hbm [resolvable:$true] %s418
          %s420 = sshll.u32 [#allocation8], 4
          %s421 = int_to_ptr.vmem [resolvable:$true] %s420
          %426 = dma.hbm_to_vmem [thread:$0]  %s419, 2048, %s421, [#allocation9], 128, 128, 8
        $region24: #{tpu_custom_call.1} parent=11 // pred_fallthru
          _
        // Predicated region
        $region25: #{tpu_custom_call.1} parent=11 // pred_check
          %p427 = pneg %p218
        $region26: #{tpu_custom_call.1} parent=11 // pred_check_branch
          %429 = sbr.rel (%p427) target = $region28
        $region27: #{tpu_custom_call.1} parent=11 // pred_region
          _
        $region28: #{tpu_custom_call.1} parent=11 // pred_fallthru
          _
        // Predicated region
        $region29: #{tpu_custom_call.1} parent=11 // pred_check
          %p430 = pneg %p239
        $region30: #{tpu_custom_call.1} parent=11 // pred_check_branch
          %432 = sbr.rel (%p430) target = $region32
        $region31: #{tpu_custom_call.1} parent=11 // pred_region
          %434 = vsyncadd [#allocation9], 0
          %s435 = sshll.u32 %s8, 4
          %s436 = int_to_ptr.hbm [resolvable:$true] %s435
          %s437 = sshll.u32 [#allocation10], 4
          %s438 = int_to_ptr.vmem [resolvable:$true] %s437
          %443 = dma.hbm_to_vmem [thread:$0]  %s436, 2048, %s438, [#allocation9], 128, 128, 8
        $region32: #{tpu_custom_call.1} parent=11 // pred_fallthru
          _
        // Predicated region
        $region33: #{tpu_custom_call.1} parent=11 // pred_check
          %p444 = pneg %p260
        $region34: #{tpu_custom_call.1} parent=11 // pred_check_branch
          %446 = sbr.rel (%p444) target = $region36
        $region35: #{tpu_custom_call.1} parent=11 // pred_region
          %448 = vsyncadd [#allocation12], 0
          %s449 = sshll.u32 %s9, 4
          %s450 = int_to_ptr.hbm [resolvable:$true] %s449
          %s451 = sshll.u32 [#allocation11], 4
          %s452 = int_to_ptr.vmem [resolvable:$true] %s451
          %457 = dma.hbm_to_vmem [thread:$0]  %s450, 2048, %s452, [#allocation12], 128, 128, 8
        $region36: #{tpu_custom_call.1} parent=11 // pred_fallthru
          _
        // Predicated region
        $region37: #{tpu_custom_call.1} parent=11 // pred_check
          %p458 = pneg %p281
        $region38: #{tpu_custom_call.1} parent=11 // pred_check_branch
          %460 = sbr.rel (%p458) target = $region40
        $region39: #{tpu_custom_call.1} parent=11 // pred_region
          _
        $region40: #{tpu_custom_call.1} parent=11 // pred_fallthru
          _
        // Predicated region
        $region41: #{tpu_custom_call.1} parent=11 // pred_check
          %p461 = pneg %p302
        $region42: #{tpu_custom_call.1} parent=11 // pred_check_branch
          %463 = sbr.rel (%p461) target = $region44
        $region43: #{tpu_custom_call.1} parent=11 // pred_region
          %465 = vsyncadd [#allocation12], 0
          %s466 = sshll.u32 %s11, 4
          %s467 = int_to_ptr.hbm [resolvable:$true] %s466
          %s468 = sshll.u32 [#allocation13], 4
          %s469 = int_to_ptr.vmem [resolvable:$true] %s468
          %474 = dma.hbm_to_vmem [thread:$0]  %s467, 2048, %s469, [#allocation12], 128, 128, 8
        $region44: #{tpu_custom_call.1} parent=11 // pred_fallthru
          _
        // Predicated region
        $region45: #{tpu_custom_call.1} parent=11 // pred_check
          %p475 = pneg %p323
        $region46: #{tpu_custom_call.1} parent=11 // pred_check_branch
          %477 = sbr.rel (%p475) target = $region48
        $region47: #{tpu_custom_call.1} parent=11 // pred_region
          %479 = vsyncadd [#allocation15], 0
          %s481 = sshll.u32 %s12, 4
          %s482 = int_to_ptr.hbm [resolvable:$true] %s481
          %s483 = sshll.u32 [#allocation14], 4
          %s484 = int_to_ptr.vmem [resolvable:$true] %s483
          %486 = dma.hbm_to_vmem [thread:$0]  %s482, 128, %s484, [#allocation15]
        $region48: #{tpu_custom_call.1} parent=11 // pred_fallthru
          _
        // Predicated region
        $region49: #{tpu_custom_call.1} parent=11 // pred_check
          %p487 = pneg %p344
        $region50: #{tpu_custom_call.1} parent=11 // pred_check_branch
          %489 = sbr.rel (%p487) target = $region52
        $region51: #{tpu_custom_call.1} parent=11 // pred_region
          _
        $region52: #{tpu_custom_call.1} parent=11 // pred_fallthru
          _
      $region12: #{tpu_custom_call.1} parent=5 // pred_fallthru
        _
      %p490 = scmp.lt.s32.totalorder %s30, 2
      // Predicated region
      $region53: #{tpu_custom_call.1} parent=5 // pred_check
        %p491 = pneg %p490
      $region54: #{tpu_custom_call.1} parent=5 // pred_check_branch
        %493 = sbr.rel (%p491) target = $region56
      $region55: #{tpu_custom_call.1} parent=5 // pred_region
        // Predicated region
        $region57: #{tpu_custom_call.1} parent=55 // pred_check
          %p494 = pneg %p50
        $region58: #{tpu_custom_call.1} parent=55 // pred_check_branch
          %496 = sbr.rel (%p494) target = $region60
        $region59: #{tpu_custom_call.1} parent=55 // pred_region
          %p497 = scmp.lt.s32.totalorder %s30, 1
          %s498 = scalar_select %p497, %s30, 1
          %s499 = smul.addr %s498, 8
          %s500 = smul.addr %s499, 8
          %s501 = scalar_lea.vmem %s0, %s500
        $region60: #{tpu_custom_call.1} parent=55 // pred_fallthru
          _
        // Predicated region
        $region61: #{tpu_custom_call.1} parent=55 // pred_check
          %p502 = pneg %p76
        $region62: #{tpu_custom_call.1} parent=55 // pred_check_branch
          %504 = sbr.rel (%p502) target = $region64
        $region63: #{tpu_custom_call.1} parent=55 // pred_region
          %p505 = scmp.lt.s32.totalorder %s30, 1
          %s506 = scalar_select %p505, %s30, 1
          %s507 = smul.addr %s506, 8
          %s508 = smul.addr %s507, 8
          %s509 = scalar_lea.vmem %s1, %s508
        $region64: #{tpu_custom_call.1} parent=55 // pred_fallthru
          _
        // Predicated region
        $region65: #{tpu_custom_call.1} parent=55 // pred_check
          %p510 = pneg %p102
        $region66: #{tpu_custom_call.1} parent=55 // pred_check_branch
          %512 = sbr.rel (%p510) target = $region68
        $region67: #{tpu_custom_call.1} parent=55 // pred_region
          %s513 = sand.u32 %s92, 1
          %s514 = scalar_lea.sflag [#allocation3], %s513
          %s515 = sand.u32 %s92, 1
          %s516 = smul.addr %s515, 64
          %s517 = scalar_lea.vmem [#allocation2], %s516
          %519 = vsyncadd %s514, 0
          %s520 = smul.addr %s30, 8
          %s521 = smul.addr %s520, 8
          %s522 = scalar_lea.hbm %s2, %s521
          %s523 = sshll.u32 %s522, 4
          %s524 = int_to_ptr.hbm [resolvable:$true] %s523
          %s525 = sshll.u32 %s517, 4
          %s526 = int_to_ptr.vmem [resolvable:$true] %s525
          %531 = dma.hbm_to_vmem [thread:$0]  %s524, 1024, %s526, %s514, 128, 128, 8
        $region68: #{tpu_custom_call.1} parent=55 // pred_fallthru
          _
        // Predicated region
        $region69: #{tpu_custom_call.1} parent=55 // pred_check
          %p532 = pneg %p128
        $region70: #{tpu_custom_call.1} parent=55 // pred_check_branch
          %534 = sbr.rel (%p532) target = $region72
        $region71: #{tpu_custom_call.1} parent=55 // pred_region
          %p535 = scmp.lt.s32.totalorder %s30, 1
          %s536 = scalar_select %p535, %s30, 1
          %s537 = smul.addr %s536, 8
          %s538 = smul.addr %s537, 8
          %s539 = scalar_lea.vmem %s3, %s538
        $region72: #{tpu_custom_call.1} parent=55 // pred_fallthru
          _
      $region56: #{tpu_custom_call.1} parent=5 // pred_fallthru
        _
      %p540 = scmp.le.s32.totalorder 1, %s30
      %p541 = scmp.lt.s32.totalorder %s30, 3
      %p542 = pnand %p540, %p541
      %p543 = pneg %p542
      // Predicated region
      $region73: #{tpu_custom_call.1} parent=5 // pred_check
        _
      $region74: #{tpu_custom_call.1} parent=5 // pred_check_branch
        %545 = sbr.rel (%p542) target = $region76
      $region75: #{tpu_custom_call.1} parent=5 // pred_region
        %s546 = ssub.s32 %s30, 1
        %s547 = sand.u32 %s95, 1
        %s548 = scalar_lea.sflag [#allocation3], %s547
        %s549 = sand.u32 %s95, 1
        %s550 = smul.addr %s549, 64
        %s551 = scalar_lea.vmem [#allocation2], %s550
        // Predicated region
        $region77: #{tpu_custom_call.1} parent=75 // pred_check
          %p552 = pneg %p108
        $region78: #{tpu_custom_call.1} parent=75 // pred_check_branch
          %554 = sbr.rel (%p552) target = $region80
        $region79: #{tpu_custom_call.1} parent=75 // pred_region
          %556 = dma.done %s548, 1024
        $region80: #{tpu_custom_call.1} parent=75 // pred_fallthru
          _
        // Predicated region
        $region81: #{tpu_custom_call.1} parent=75 // pred_check
          %p557 = pneg %p155
        $region82: #{tpu_custom_call.1} parent=75 // pred_check_branch
          %559 = sbr.rel (%p557) target = $region84
        $region83: #{tpu_custom_call.1} parent=75 // pred_region
          %561 = dma.done [#allocation6], 2048
        $region84: #{tpu_custom_call.1} parent=75 // pred_fallthru
          _
        // Predicated region
        $region85: #{tpu_custom_call.1} parent=75 // pred_check
          %p562 = pneg %p176
        $region86: #{tpu_custom_call.1} parent=75 // pred_check_branch
          %564 = sbr.rel (%p562) target = $region88
        $region87: #{tpu_custom_call.1} parent=75 // pred_region
          %566 = dma.done [#allocation6], 2048
        $region88: #{tpu_custom_call.1} parent=75 // pred_fallthru
          _
        // Predicated region
        $region89: #{tpu_custom_call.1} parent=75 // pred_check
          %p567 = pneg %p197
        $region90: #{tpu_custom_call.1} parent=75 // pred_check_branch
          %569 = sbr.rel (%p567) target = $region92
        $region91: #{tpu_custom_call.1} parent=75 // pred_region
          %571 = dma.done [#allocation9], 2048
        $region92: #{tpu_custom_call.1} parent=75 // pred_fallthru
          _
        // Predicated region
        $region93: #{tpu_custom_call.1} parent=75 // pred_check
          %p572 = pneg %p239
        $region94: #{tpu_custom_call.1} parent=75 // pred_check_branch
          %574 = sbr.rel (%p572) target = $region96
        $region95: #{tpu_custom_call.1} parent=75 // pred_region
          %576 = dma.done [#allocation9], 2048
        $region96: #{tpu_custom_call.1} parent=75 // pred_fallthru
          _
        // Predicated region
        $region97: #{tpu_custom_call.1} parent=75 // pred_check
          %p577 = pneg %p260
        $region98: #{tpu_custom_call.1} parent=75 // pred_check_branch
          %579 = sbr.rel (%p577) target = $region100
        $region99: #{tpu_custom_call.1} parent=75 // pred_region
          %581 = dma.done [#allocation12], 2048
        $region100: #{tpu_custom_call.1} parent=75 // pred_fallthru
          _
        // Predicated region
        $region101: #{tpu_custom_call.1} parent=75 // pred_check
          %p582 = pneg %p302
        $region102: #{tpu_custom_call.1} parent=75 // pred_check_branch
          %584 = sbr.rel (%p582) target = $region104
        $region103: #{tpu_custom_call.1} parent=75 // pred_region
          %586 = dma.done [#allocation12], 2048
        $region104: #{tpu_custom_call.1} parent=75 // pred_fallthru
          _
        // Predicated region
        $region105: #{tpu_custom_call.1} parent=75 // pred_check
          %p587 = pneg %p323
        $region106: #{tpu_custom_call.1} parent=75 // pred_check_branch
          %589 = sbr.rel (%p587) target = $region108
        $region107: #{tpu_custom_call.1} parent=75 // pred_region
          %591 = dma.done [#allocation15], 128
        $region108: #{tpu_custom_call.1} parent=75 // pred_fallthru
          _
        %p592 = scmp.lt.s32.totalorder %s35, 1
        %s593 = scalar_select %p592, %s35, 1
        %s594 = smul.addr %s593, 8
        %s595 = smul.addr %s594, 8
        %s596 = scalar_lea.vmem %s0, %s595
        %p597 = pneg %p56
        %p598 = pneg %p53
        %p599 = scmp.lt.s32.totalorder %s35, 1
        %s600 = scalar_select %p599, %s35, 1
        %s601 = smul.addr %s600, 8
        %s602 = smul.addr %s601, 8
        %s603 = scalar_lea.vmem %s1, %s602
        %p604 = pneg %p82
        %p605 = pneg %p79
        %s606 = sand.u32 %s95, 1
        %s607 = scalar_lea.sflag [#allocation3], %s606
        %s608 = sand.u32 %s95, 1
        %s609 = smul.addr %s608, 64
        %s610 = scalar_lea.vmem [#allocation2], %s609
        %p611 = pneg %p108
        %p612 = pneg %p105
        %p613 = scmp.lt.s32.totalorder %s35, 1
        %s614 = scalar_select %p613, %s35, 1
        %s615 = smul.addr %s614, 8
        %s616 = smul.addr %s615, 8
        %s617 = scalar_lea.vmem %s3, %s616
        %p618 = pneg %p134
        %p619 = pneg %p131
        %p620 = pneg %p155
        %p621 = pneg %p152
        %p622 = pneg %p176
        %p623 = pneg %p173
        %p624 = pneg %p197
        %p625 = pneg %p194
        %p626 = pneg %p218
        %p627 = pneg %p215
        %p628 = pneg %p239
        %p629 = pneg %p236
        %p630 = pneg %p260
        %p631 = pneg %p257
        %p632 = pneg %p281
        %p633 = pneg %p278
        %p634 = pneg %p302
        %p635 = pneg %p299
        %p636 = pneg %p323
        %p637 = pneg %p320
        %p638 = pneg %p344
        %p639 = pneg %p341
        %p640 = pneg %p370
        %p641 = pneg %p367
        %s642 = sand.u32 %s357, 1
        %s643 = scalar_lea.sflag [#allocation4], %s642
        %s644 = sand.u32 %s357, 1
        %s645 = smul.addr %s644, 64
        %s646 = scalar_lea.vmem [#allocation16], %s645
        %p647 = scmp.lt.s32.totalorder %s35, 1
        %s648 = scalar_select %p647, %s35, 1
        %s649 = smul.addr %s648, 8
        %s650 = smul.addr %s649, 8
        %s651 = scalar_lea.vmem %s0, %s650
        %p652 = scmp.lt.s32.totalorder %s35, 1
        %s653 = scalar_select %p652, %s35, 1
        %s654 = smul.addr %s653, 8
        %s655 = smul.addr %s654, 8
        %s656 = scalar_lea.vmem %s1, %s655
        %p657 = scmp.lt.s32.totalorder %s35, 1
        %s658 = scalar_select %p657, %s35, 1
        %s659 = smul.addr %s658, 8
        %s660 = smul.addr %s659, 8
        %s661 = scalar_lea.vmem %s3, %s660
        %v662 = vld [vmem:[%s651] sm:$0xff]
        %v663 = vld [vmem:[%s651 + $0x8] sm:$0xff]
        %v664 = vld [vmem:[%s651 + $0x10] sm:$0xff]
        %v665 = vld [vmem:[%s651 + $0x18] sm:$0xff]
        %v666 = vld [vmem:[%s651 + $0x20] sm:$0xff]
        %v667 = vld [vmem:[%s651 + $0x28] sm:$0xff]
        %v668 = vld [vmem:[%s651 + $0x30] sm:$0xff]
        %v669 = vld [vmem:[%s651 + $0x38] sm:$0xff]
        %v670 = vld [vmem:[%s656] sm:$0xff]
        %v671 = vld [vmem:[%s656 + $0x8] sm:$0xff]
        %v672 = vld [vmem:[%s656 + $0x10] sm:$0xff]
        %v673 = vld [vmem:[%s656 + $0x18] sm:$0xff]
        %v674 = vld [vmem:[%s656 + $0x20] sm:$0xff]
        %v675 = vld [vmem:[%s656 + $0x28] sm:$0xff]
        %v676 = vld [vmem:[%s656 + $0x30] sm:$0xff]
        %v677 = vld [vmem:[%s656 + $0x38] sm:$0xff]
        %v678 = vld [vmem:[%s551] sm:$0xff]
        %v679 = vld [vmem:[%s551 + $0x8] sm:$0xff]
        %v680 = vld [vmem:[%s551 + $0x10] sm:$0xff]
        %v681 = vld [vmem:[%s551 + $0x18] sm:$0xff]
        %v682 = vld [vmem:[%s551 + $0x20] sm:$0xff]
        %v683 = vld [vmem:[%s551 + $0x28] sm:$0xff]
        %v684 = vld [vmem:[%s551 + $0x30] sm:$0xff]
        %v685 = vld [vmem:[%s551 + $0x38] sm:$0xff]
        %v686 = vld [vmem:[%s661] sm:$0xff]
        %v687 = vld [vmem:[%s661 + $0x8] sm:$0xff]
        %v688 = vld [vmem:[%s661 + $0x10] sm:$0xff]
        %v689 = vld [vmem:[%s661 + $0x18] sm:$0xff]
        %v690 = vld [vmem:[%s661 + $0x20] sm:$0xff]
        %v691 = vld [vmem:[%s661 + $0x28] sm:$0xff]
        %v692 = vld [vmem:[%s661 + $0x30] sm:$0xff]
        %v693 = vld [vmem:[%s661 + $0x38] sm:$0xff]
        %v694 = vld [vmem:[%s7] sm:$0xff]
        %v695 = vld [vmem:[#allocation5] sm:$0xff]
        %v696 = vld [vmem:[#allocation5 + $0x8] sm:$0xff]
        %v697 = vld [vmem:[#allocation5 + $0x10] sm:$0xff]
        %v698 = vld [vmem:[#allocation5 + $0x18] sm:$0xff]
        %v699 = vld [vmem:[#allocation5 + $0x20] sm:$0xff]
        %v700 = vld [vmem:[#allocation5 + $0x28] sm:$0xff]
        %v701 = vld [vmem:[#allocation5 + $0x30] sm:$0xff]
        %v702 = vld [vmem:[#allocation5 + $0x38] sm:$0xff]
        %v703 = vld [vmem:[#allocation5 + $0x40] sm:$0xff]
        %v704 = vld [vmem:[#allocation5 + $0x48] sm:$0xff]
        %v705 = vld [vmem:[#allocation5 + $0x50] sm:$0xff]
        %v706 = vld [vmem:[#allocation5 + $0x58] sm:$0xff]
        %v707 = vld [vmem:[#allocation5 + $0x60] sm:$0xff]
        %v708 = vld [vmem:[#allocation5 + $0x68] sm:$0xff]
        %v709 = vld [vmem:[#allocation5 + $0x70] sm:$0xff]
        %v710 = vld [vmem:[#allocation5 + $0x78] sm:$0xff]
        %v711 = vperm.slane %v694, 0
        %712 = vmatpush.msra.mxu0 %v710
        %713 = vmatpush.msra.mxu0 %v709
        %714 = vmatpush.msra.mxu0 %v708
        %715 = vmatpush.msra.mxu0 %v707
        %716 = vmatpush.msra.mxu0 %v706
        %717 = vmatpush.msra.mxu0 %v705
        %718 = vmatpush.msra.mxu0 %v704
        %719 = vmatpush.msra.mxu0 %v703
        %720 = vmatpush.msra.mxu0 %v702
        %721 = vmatpush.msra.mxu0 %v701
        %722 = vmatpush.msra.mxu0 %v700
        %723 = vmatpush.msra.mxu0 %v699
        %724 = vmatpush.msra.mxu0 %v698
        %725 = vmatpush.msra.mxu0 %v697
        %726 = vmatpush.msra.mxu0 %v696
        %727 = vmatpush.msra.mxu0 %v695
        %728 = vmatmul.f32.gmra.mxu0 %v662
        %v729 = vpop.f32.mrf.mxu0
        %v730 = vadd.f32 %v711, %v729
        %731 = vmatmul.f32.gmra.mxu0 %v663
        %v732 = vpop.f32.mrf.mxu0
        %v733 = vadd.f32 %v711, %v732
        %734 = vmatmul.f32.gmra.mxu0 %v664
        %v735 = vpop.f32.mrf.mxu0
        %v736 = vadd.f32 %v711, %v735
        %737 = vmatmul.f32.gmra.mxu0 %v665
        %v738 = vpop.f32.mrf.mxu0
        %v739 = vadd.f32 %v711, %v738
        %740 = vmatmul.f32.gmra.mxu0 %v666
        %v741 = vpop.f32.mrf.mxu0
        %v742 = vadd.f32 %v711, %v741
        %743 = vmatmul.f32.gmra.mxu0 %v667
        %v744 = vpop.f32.mrf.mxu0
        %v745 = vadd.f32 %v711, %v744
        %746 = vmatmul.f32.gmra.mxu0 %v668
        %v747 = vpop.f32.mrf.mxu0
        %v748 = vadd.f32 %v711, %v747
        %749 = vmatmul.f32.gmra.mxu0 %v669
        %v750 = vpop.f32.mrf.mxu0
        %v751 = vadd.f32 %v711, %v750
        %752 = vdwg.mxu0
        %v753 = vld [vmem:[#allocation7] sm:$0xff]
        %v754 = vld [vmem:[#allocation7 + $0x8] sm:$0xff]
        %v755 = vld [vmem:[#allocation7 + $0x10] sm:$0xff]
        %v756 = vld [vmem:[#allocation7 + $0x18] sm:$0xff]
        %v757 = vld [vmem:[#allocation7 + $0x20] sm:$0xff]
        %v758 = vld [vmem:[#allocation7 + $0x28] sm:$0xff]
        %v759 = vld [vmem:[#allocation7 + $0x30] sm:$0xff]
        %v760 = vld [vmem:[#allocation7 + $0x38] sm:$0xff]
        %v761 = vld [vmem:[#allocation7 + $0x40] sm:$0xff]
        %v762 = vld [vmem:[#allocation7 + $0x48] sm:$0xff]
        %v763 = vld [vmem:[#allocation7 + $0x50] sm:$0xff]
        %v764 = vld [vmem:[#allocation7 + $0x58] sm:$0xff]
        %v765 = vld [vmem:[#allocation7 + $0x60] sm:$0xff]
        %v766 = vld [vmem:[#allocation7 + $0x68] sm:$0xff]
        %v767 = vld [vmem:[#allocation7 + $0x70] sm:$0xff]
        %v768 = vld [vmem:[#allocation7 + $0x78] sm:$0xff]
        %v769 = vperm.slane %v694, 1
        %770 = vmatpush.msra.mxu0 %v768
        %771 = vmatpush.msra.mxu0 %v767
        %772 = vmatpush.msra.mxu0 %v766
        %773 = vmatpush.msra.mxu0 %v765
        %774 = vmatpush.msra.mxu0 %v764
        %775 = vmatpush.msra.mxu0 %v763
        %776 = vmatpush.msra.mxu0 %v762
        %777 = vmatpush.msra.mxu0 %v761
        %778 = vmatpush.msra.mxu0 %v760
        %779 = vmatpush.msra.mxu0 %v759
        %780 = vmatpush.msra.mxu0 %v758
        %781 = vmatpush.msra.mxu0 %v757
        %782 = vmatpush.msra.mxu0 %v756
        %783 = vmatpush.msra.mxu0 %v755
        %784 = vmatpush.msra.mxu0 %v754
        %785 = vmatpush.msra.mxu0 %v753
        %786 = vmatmul.f32.gmra.mxu0 %v670
        %v787 = vpop.f32.mrf.mxu0
        %v788 = vadd.f32 %v769, %v787
        %789 = vmatmul.f32.gmra.mxu0 %v671
        %v790 = vpop.f32.mrf.mxu0
        %v791 = vadd.f32 %v769, %v790
        %792 = vmatmul.f32.gmra.mxu0 %v672
        %v793 = vpop.f32.mrf.mxu0
        %v794 = vadd.f32 %v769, %v793
        %795 = vmatmul.f32.gmra.mxu0 %v673
        %v796 = vpop.f32.mrf.mxu0
        %v797 = vadd.f32 %v769, %v796
        %798 = vmatmul.f32.gmra.mxu0 %v674
        %v799 = vpop.f32.mrf.mxu0
        %v800 = vadd.f32 %v769, %v799
        %801 = vmatmul.f32.gmra.mxu0 %v675
        %v802 = vpop.f32.mrf.mxu0
        %v803 = vadd.f32 %v769, %v802
        %804 = vmatmul.f32.gmra.mxu0 %v676
        %v805 = vpop.f32.mrf.mxu0
        %v806 = vadd.f32 %v769, %v805
        %807 = vmatmul.f32.gmra.mxu0 %v677
        %v808 = vpop.f32.mrf.mxu0
        %v809 = vadd.f32 %v769, %v808
        %810 = vdwg.mxu0
        %v811 = vld [vmem:[#allocation8] sm:$0xff]
        %v812 = vld [vmem:[#allocation8 + $0x8] sm:$0xff]
        %v813 = vld [vmem:[#allocation8 + $0x10] sm:$0xff]
        %v814 = vld [vmem:[#allocation8 + $0x18] sm:$0xff]
        %v815 = vld [vmem:[#allocation8 + $0x20] sm:$0xff]
        %v816 = vld [vmem:[#allocation8 + $0x28] sm:$0xff]
        %v817 = vld [vmem:[#allocation8 + $0x30] sm:$0xff]
        %v818 = vld [vmem:[#allocation8 + $0x38] sm:$0xff]
        %v819 = vld [vmem:[#allocation8 + $0x40] sm:$0xff]
        %v820 = vld [vmem:[#allocation8 + $0x48] sm:$0xff]
        %v821 = vld [vmem:[#allocation8 + $0x50] sm:$0xff]
        %v822 = vld [vmem:[#allocation8 + $0x58] sm:$0xff]
        %v823 = vld [vmem:[#allocation8 + $0x60] sm:$0xff]
        %v824 = vld [vmem:[#allocation8 + $0x68] sm:$0xff]
        %v825 = vld [vmem:[#allocation8 + $0x70] sm:$0xff]
        %v826 = vld [vmem:[#allocation8 + $0x78] sm:$0xff]
        %v827 = vperm.slane %v694, 2
        %828 = vmatpush.msra.mxu0 %v826
        %829 = vmatpush.msra.mxu0 %v825
        %830 = vmatpush.msra.mxu0 %v824
        %831 = vmatpush.msra.mxu0 %v823
        %832 = vmatpush.msra.mxu0 %v822
        %833 = vmatpush.msra.mxu0 %v821
        %834 = vmatpush.msra.mxu0 %v820
        %835 = vmatpush.msra.mxu0 %v819
        %836 = vmatpush.msra.mxu0 %v818
        %837 = vmatpush.msra.mxu0 %v817
        %838 = vmatpush.msra.mxu0 %v816
        %839 = vmatpush.msra.mxu0 %v815
        %840 = vmatpush.msra.mxu0 %v814
        %841 = vmatpush.msra.mxu0 %v813
        %842 = vmatpush.msra.mxu0 %v812
        %843 = vmatpush.msra.mxu0 %v811
        %844 = vmatmul.f32.gmra.mxu0 %v678
        %v845 = vpop.f32.mrf.mxu0
        %v846 = vadd.f32 %v827, %v845
        %847 = vmatmul.f32.gmra.mxu0 %v679
        %v848 = vpop.f32.mrf.mxu0
        %v849 = vadd.f32 %v827, %v848
        %850 = vmatmul.f32.gmra.mxu0 %v680
        %v851 = vpop.f32.mrf.mxu0
        %v852 = vadd.f32 %v827, %v851
        %853 = vmatmul.f32.gmra.mxu0 %v681
        %v854 = vpop.f32.mrf.mxu0
        %v855 = vadd.f32 %v827, %v854
        %856 = vmatmul.f32.gmra.mxu0 %v682
        %v857 = vpop.f32.mrf.mxu0
        %v858 = vadd.f32 %v827, %v857
        %859 = vmatmul.f32.gmra.mxu0 %v683
        %v860 = vpop.f32.mrf.mxu0
        %v861 = vadd.f32 %v827, %v860
        %862 = vmatmul.f32.gmra.mxu0 %v684
        %v863 = vpop.f32.mrf.mxu0
        %v864 = vadd.f32 %v827, %v863
        %865 = vmatmul.f32.gmra.mxu0 %v685
        %v866 = vpop.f32.mrf.mxu0
        %v867 = vadd.f32 %v827, %v866
        %868 = vdwg.mxu0
        %v869 = vld [vmem:[#allocation10] sm:$0xff]
        %v870 = vld [vmem:[#allocation10 + $0x8] sm:$0xff]
        %v871 = vld [vmem:[#allocation10 + $0x10] sm:$0xff]
        %v872 = vld [vmem:[#allocation10 + $0x18] sm:$0xff]
        %v873 = vld [vmem:[#allocation10 + $0x20] sm:$0xff]
        %v874 = vld [vmem:[#allocation10 + $0x28] sm:$0xff]
        %v875 = vld [vmem:[#allocation10 + $0x30] sm:$0xff]
        %v876 = vld [vmem:[#allocation10 + $0x38] sm:$0xff]
        %v877 = vld [vmem:[#allocation10 + $0x40] sm:$0xff]
        %v878 = vld [vmem:[#allocation10 + $0x48] sm:$0xff]
        %v879 = vld [vmem:[#allocation10 + $0x50] sm:$0xff]
        %v880 = vld [vmem:[#allocation10 + $0x58] sm:$0xff]
        %v881 = vld [vmem:[#allocation10 + $0x60] sm:$0xff]
        %v882 = vld [vmem:[#allocation10 + $0x68] sm:$0xff]
        %v883 = vld [vmem:[#allocation10 + $0x70] sm:$0xff]
        %v884 = vld [vmem:[#allocation10 + $0x78] sm:$0xff]
        %885 = vmatpush.msra.mxu0 %v884
        %886 = vmatpush.msra.mxu0 %v883
        %887 = vmatpush.msra.mxu0 %v882
        %888 = vmatpush.msra.mxu0 %v881
        %889 = vmatpush.msra.mxu0 %v880
        %890 = vmatpush.msra.mxu0 %v879
        %891 = vmatpush.msra.mxu0 %v878
        %892 = vmatpush.msra.mxu0 %v877
        %893 = vmatpush.msra.mxu0 %v876
        %894 = vmatpush.msra.mxu0 %v875
        %895 = vmatpush.msra.mxu0 %v874
        %896 = vmatpush.msra.mxu0 %v873
        %897 = vmatpush.msra.mxu0 %v872
        %898 = vmatpush.msra.mxu0 %v871
        %899 = vmatpush.msra.mxu0 %v870
        %900 = vmatpush.msra.mxu0 %v869
        %901 = vmatmul.f32.gmra.mxu0 %v788
        %v902 = vpop.f32.mrf.mxu0
        %v903 = vadd.f32 0.0, %v902
        %904 = vmatmul.f32.gmra.mxu0 %v791
        %v905 = vpop.f32.mrf.mxu0
        %v906 = vadd.f32 0.0, %v905
        %907 = vmatmul.f32.gmra.mxu0 %v794
        %v908 = vpop.f32.mrf.mxu0
        %v909 = vadd.f32 0.0, %v908
        %910 = vmatmul.f32.gmra.mxu0 %v797
        %v911 = vpop.f32.mrf.mxu0
        %v912 = vadd.f32 0.0, %v911
        %913 = vmatmul.f32.gmra.mxu0 %v800
        %v914 = vpop.f32.mrf.mxu0
        %v915 = vadd.f32 0.0, %v914
        %916 = vmatmul.f32.gmra.mxu0 %v803
        %v917 = vpop.f32.mrf.mxu0
        %v918 = vadd.f32 0.0, %v917
        %919 = vmatmul.f32.gmra.mxu0 %v806
        %v920 = vpop.f32.mrf.mxu0
        %v921 = vadd.f32 0.0, %v920
        %922 = vmatmul.f32.gmra.mxu0 %v809
        %v923 = vpop.f32.mrf.mxu0
        %v924 = vadd.f32 0.0, %v923
        %925 = vmatmul.f32.gmra.mxu0 %v846
        %v926 = vpop.f32.mrf.mxu0
        %v927 = vadd.f32 0.0, %v926
        %928 = vmatmul.f32.gmra.mxu0 %v849
        %v929 = vpop.f32.mrf.mxu0
        %v930 = vadd.f32 0.0, %v929
        %931 = vmatmul.f32.gmra.mxu0 %v852
        %v932 = vpop.f32.mrf.mxu0
        %v933 = vadd.f32 0.0, %v932
        %934 = vmatmul.f32.gmra.mxu0 %v855
        %v935 = vpop.f32.mrf.mxu0
        %v936 = vadd.f32 0.0, %v935
        %937 = vmatmul.f32.gmra.mxu0 %v858
        %v938 = vpop.f32.mrf.mxu0
        %v939 = vadd.f32 0.0, %v938
        %940 = vmatmul.f32.gmra.mxu0 %v861
        %v941 = vpop.f32.mrf.mxu0
        %v942 = vadd.f32 0.0, %v941
        %943 = vmatmul.f32.gmra.mxu0 %v864
        %v944 = vpop.f32.mrf.mxu0
        %v945 = vadd.f32 0.0, %v944
        %946 = vmatmul.f32.gmra.mxu0 %v867
        %v947 = vpop.f32.mrf.mxu0
        %v948 = vadd.f32 0.0, %v947
        %949 = vdwg.mxu0
        %v950 = vsub.f32 %v788, %v903
        %v951 = vsub.f32 %v791, %v906
        %v952 = vsub.f32 %v794, %v909
        %v953 = vsub.f32 %v797, %v912
        %v954 = vsub.f32 %v800, %v915
        %v955 = vsub.f32 %v803, %v918
        %v956 = vsub.f32 %v806, %v921
        %v957 = vsub.f32 %v809, %v924
        %v958 = vsub.f32 %v846, %v927
        %v959 = vsub.f32 %v849, %v930
        %v960 = vsub.f32 %v852, %v933
        %v961 = vsub.f32 %v855, %v936
        %v962 = vsub.f32 %v858, %v939
        %v963 = vsub.f32 %v861, %v942
        %v964 = vsub.f32 %v864, %v945
        %v965 = vsub.f32 %v867, %v948
        %v966 = vmul.f32 %v950, %v950
        %v967 = vmul.f32 %v951, %v951
        %v968 = vmul.f32 %v952, %v952
        %v969 = vmul.f32 %v953, %v953
        %v970 = vmul.f32 %v954, %v954
        %v971 = vmul.f32 %v955, %v955
        %v972 = vmul.f32 %v956, %v956
        %v973 = vmul.f32 %v957, %v957
        %v974 = vmul.f32 %v958, %v958
        %v975 = vmul.f32 %v959, %v959
        %v976 = vmul.f32 %v960, %v960
        %v977 = vmul.f32 %v961, %v961
        %v978 = vmul.f32 %v962, %v962
        %v979 = vmul.f32 %v963, %v963
        %v980 = vmul.f32 %v964, %v964
        %v981 = vmul.f32 %v965, %v965
        %982 = vmatpush.msra.mxu0 %v884
        %983 = vmatpush.msra.mxu0 %v883
        %984 = vmatpush.msra.mxu0 %v882
        %985 = vmatpush.msra.mxu0 %v881
        %986 = vmatpush.msra.mxu0 %v880
        %987 = vmatpush.msra.mxu0 %v879
        %988 = vmatpush.msra.mxu0 %v878
        %989 = vmatpush.msra.mxu0 %v877
        %990 = vmatpush.msra.mxu0 %v876
        %991 = vmatpush.msra.mxu0 %v875
        %992 = vmatpush.msra.mxu0 %v874
        %993 = vmatpush.msra.mxu0 %v873
        %994 = vmatpush.msra.mxu0 %v872
        %995 = vmatpush.msra.mxu0 %v871
        %996 = vmatpush.msra.mxu0 %v870
        %997 = vmatpush.msra.mxu0 %v869
        %998 = vmatmul.f32.gmra.mxu0 %v966
        %v999 = vpop.f32.mrf.mxu0
        %v1000 = vadd.f32 1e-05, %v999
        %1001 = vmatmul.f32.gmra.mxu0 %v967
        %v1002 = vpop.f32.mrf.mxu0
        %v1003 = vadd.f32 1e-05, %v1002
        %1004 = vmatmul.f32.gmra.mxu0 %v968
        %v1005 = vpop.f32.mrf.mxu0
        %v1006 = vadd.f32 1e-05, %v1005
        %1007 = vmatmul.f32.gmra.mxu0 %v969
        %v1008 = vpop.f32.mrf.mxu0
        %v1009 = vadd.f32 1e-05, %v1008
        %1010 = vmatmul.f32.gmra.mxu0 %v970
        %v1011 = vpop.f32.mrf.mxu0
        %v1012 = vadd.f32 1e-05, %v1011
        %1013 = vmatmul.f32.gmra.mxu0 %v971
        %v1014 = vpop.f32.mrf.mxu0
        %v1015 = vadd.f32 1e-05, %v1014
        %1016 = vmatmul.f32.gmra.mxu0 %v972
        %v1017 = vpop.f32.mrf.mxu0
        %v1018 = vadd.f32 1e-05, %v1017
        %1019 = vmatmul.f32.gmra.mxu0 %v973
        %v1020 = vpop.f32.mrf.mxu0
        %v1021 = vadd.f32 1e-05, %v1020
        %1022 = vmatmul.f32.gmra.mxu0 %v974
        %v1023 = vpop.f32.mrf.mxu0
        %v1024 = vadd.f32 1e-05, %v1023
        %1025 = vmatmul.f32.gmra.mxu0 %v975
        %v1026 = vpop.f32.mrf.mxu0
        %v1027 = vadd.f32 1e-05, %v1026
        %1028 = vmatmul.f32.gmra.mxu0 %v976
        %v1029 = vpop.f32.mrf.mxu0
        %v1030 = vadd.f32 1e-05, %v1029
        %1031 = vmatmul.f32.gmra.mxu0 %v977
        %v1032 = vpop.f32.mrf.mxu0
        %v1033 = vadd.f32 1e-05, %v1032
        %1034 = vmatmul.f32.gmra.mxu0 %v978
        %v1035 = vpop.f32.mrf.mxu0
        %v1036 = vadd.f32 1e-05, %v1035
        %1037 = vmatmul.f32.gmra.mxu0 %v979
        %v1038 = vpop.f32.mrf.mxu0
        %v1039 = vadd.f32 1e-05, %v1038
        %1040 = vmatmul.f32.gmra.mxu0 %v980
        %v1041 = vpop.f32.mrf.mxu0
        %v1042 = vadd.f32 1e-05, %v1041
        %1043 = vmatmul.f32.gmra.mxu0 %v981
        %v1044 = vpop.f32.mrf.mxu0
        %v1045 = vadd.f32 1e-05, %v1044
        %1046 = vdwg.mxu0
        %v1047 = vrsqrt.pop %v1000
        %v1048 = vmul.f32 %v1047, %v1000
        %v1049 = vmul.f32 %v1048, %v1047
        %v1050 = vmul.f32 0.5, %v1049
        %v1051 = vsub.f32 1.5, %v1050
        %v1052 = vmul.f32 %v1047, %v1051
        %vm1053 = vweird.f32 %v1000
        %vm1054 = vweird.f32 %v1047
        %vm1055 = vmor %vm1053, %vm1054
        %v1056 = vsel %vm1055, %v1047, %v1052
        %v1057 = vrsqrt.pop %v1003
        %v1058 = vmul.f32 %v1057, %v1003
        %v1059 = vmul.f32 %v1058, %v1057
        %v1060 = vmul.f32 0.5, %v1059
        %v1061 = vsub.f32 1.5, %v1060
        %v1062 = vmul.f32 %v1057, %v1061
        %vm1063 = vweird.f32 %v1003
        %vm1064 = vweird.f32 %v1057
        %vm1065 = vmor %vm1063, %vm1064
        %v1066 = vsel %vm1065, %v1057, %v1062
        %v1067 = vrsqrt.pop %v1006
        %v1068 = vmul.f32 %v1067, %v1006
        %v1069 = vmul.f32 %v1068, %v1067
        %v1070 = vmul.f32 0.5, %v1069
        %v1071 = vsub.f32 1.5, %v1070
        %v1072 = vmul.f32 %v1067, %v1071
        %vm1073 = vweird.f32 %v1006
        %vm1074 = vweird.f32 %v1067
        %vm1075 = vmor %vm1073, %vm1074
        %v1076 = vsel %vm1075, %v1067, %v1072
        %v1077 = vrsqrt.pop %v1009
        %v1078 = vmul.f32 %v1077, %v1009
        %v1079 = vmul.f32 %v1078, %v1077
        %v1080 = vmul.f32 0.5, %v1079
        %v1081 = vsub.f32 1.5, %v1080
        %v1082 = vmul.f32 %v1077, %v1081
        %vm1083 = vweird.f32 %v1009
        %vm1084 = vweird.f32 %v1077
        %vm1085 = vmor %vm1083, %vm1084
        %v1086 = vsel %vm1085, %v1077, %v1082
        %v1087 = vrsqrt.pop %v1012
        %v1088 = vmul.f32 %v1087, %v1012
        %v1089 = vmul.f32 %v1088, %v1087
        %v1090 = vmul.f32 0.5, %v1089
        %v1091 = vsub.f32 1.5, %v1090
        %v1092 = vmul.f32 %v1087, %v1091
        %vm1093 = vweird.f32 %v1012
        %vm1094 = vweird.f32 %v1087
        %vm1095 = vmor %vm1093, %vm1094
        %v1096 = vsel %vm1095, %v1087, %v1092
        %v1097 = vrsqrt.pop %v1015
        %v1098 = vmul.f32 %v1097, %v1015
        %v1099 = vmul.f32 %v1098, %v1097
        %v1100 = vmul.f32 0.5, %v1099
        %v1101 = vsub.f32 1.5, %v1100
        %v1102 = vmul.f32 %v1097, %v1101
        %vm1103 = vweird.f32 %v1015
        %vm1104 = vweird.f32 %v1097
        %vm1105 = vmor %vm1103, %vm1104
        %v1106 = vsel %vm1105, %v1097, %v1102
        %v1107 = vrsqrt.pop %v1018
        %v1108 = vmul.f32 %v1107, %v1018
        %v1109 = vmul.f32 %v1108, %v1107
        %v1110 = vmul.f32 0.5, %v1109
        %v1111 = vsub.f32 1.5, %v1110
        %v1112 = vmul.f32 %v1107, %v1111
        %vm1113 = vweird.f32 %v1018
        %vm1114 = vweird.f32 %v1107
        %vm1115 = vmor %vm1113, %vm1114
        %v1116 = vsel %vm1115, %v1107, %v1112
        %v1117 = vrsqrt.pop %v1021
        %v1118 = vmul.f32 %v1117, %v1021
        %v1119 = vmul.f32 %v1118, %v1117
        %v1120 = vmul.f32 0.5, %v1119
        %v1121 = vsub.f32 1.5, %v1120
        %v1122 = vmul.f32 %v1117, %v1121
        %vm1123 = vweird.f32 %v1021
        %vm1124 = vweird.f32 %v1117
        %vm1125 = vmor %vm1123, %vm1124
        %v1126 = vsel %vm1125, %v1117, %v1122
        %v1127 = vrsqrt.pop %v1024
        %v1128 = vmul.f32 %v1127, %v1024
        %v1129 = vmul.f32 %v1128, %v1127
        %v1130 = vmul.f32 0.5, %v1129
        %v1131 = vsub.f32 1.5, %v1130
        %v1132 = vmul.f32 %v1127, %v1131
        %vm1133 = vweird.f32 %v1024
        %vm1134 = vweird.f32 %v1127
        %vm1135 = vmor %vm1133, %vm1134
        %v1136 = vsel %vm1135, %v1127, %v1132
        %v1137 = vrsqrt.pop %v1027
        %v1138 = vmul.f32 %v1137, %v1027
        %v1139 = vmul.f32 %v1138, %v1137
        %v1140 = vmul.f32 0.5, %v1139
        %v1141 = vsub.f32 1.5, %v1140
        %v1142 = vmul.f32 %v1137, %v1141
        %vm1143 = vweird.f32 %v1027
        %vm1144 = vweird.f32 %v1137
        %vm1145 = vmor %vm1143, %vm1144
        %v1146 = vsel %vm1145, %v1137, %v1142
        %v1147 = vrsqrt.pop %v1030
        %v1148 = vmul.f32 %v1147, %v1030
        %v1149 = vmul.f32 %v1148, %v1147
        %v1150 = vmul.f32 0.5, %v1149
        %v1151 = vsub.f32 1.5, %v1150
        %v1152 = vmul.f32 %v1147, %v1151
        %vm1153 = vweird.f32 %v1030
        %vm1154 = vweird.f32 %v1147
        %vm1155 = vmor %vm1153, %vm1154
        %v1156 = vsel %vm1155, %v1147, %v1152
        %v1157 = vrsqrt.pop %v1033
        %v1158 = vmul.f32 %v1157, %v1033
        %v1159 = vmul.f32 %v1158, %v1157
        %v1160 = vmul.f32 0.5, %v1159
        %v1161 = vsub.f32 1.5, %v1160
        %v1162 = vmul.f32 %v1157, %v1161
        %vm1163 = vweird.f32 %v1033
        %vm1164 = vweird.f32 %v1157
        %vm1165 = vmor %vm1163, %vm1164
        %v1166 = vsel %vm1165, %v1157, %v1162
        %v1167 = vrsqrt.pop %v1036
        %v1168 = vmul.f32 %v1167, %v1036
        %v1169 = vmul.f32 %v1168, %v1167
        %v1170 = vmul.f32 0.5, %v1169
        %v1171 = vsub.f32 1.5, %v1170
        %v1172 = vmul.f32 %v1167, %v1171
        %vm1173 = vweird.f32 %v1036
        %vm1174 = vweird.f32 %v1167
        %vm1175 = vmor %vm1173, %vm1174
        %v1176 = vsel %vm1175, %v1167, %v1172
        %v1177 = vrsqrt.pop %v1039
        %v1178 = vmul.f32 %v1177, %v1039
        %v1179 = vmul.f32 %v1178, %v1177
        %v1180 = vmul.f32 0.5, %v1179
        %v1181 = vsub.f32 1.5, %v1180
        %v1182 = vmul.f32 %v1177, %v1181
        %vm1183 = vweird.f32 %v1039
        %vm1184 = vweird.f32 %v1177
        %vm1185 = vmor %vm1183, %vm1184
        %v1186 = vsel %vm1185, %v1177, %v1182
        %v1187 = vrsqrt.pop %v1042
        %v1188 = vmul.f32 %v1187, %v1042
        %v1189 = vmul.f32 %v1188, %v1187
        %v1190 = vmul.f32 0.5, %v1189
        %v1191 = vsub.f32 1.5, %v1190
        %v1192 = vmul.f32 %v1187, %v1191
        %vm1193 = vweird.f32 %v1042
        %vm1194 = vweird.f32 %v1187
        %vm1195 = vmor %vm1193, %vm1194
        %v1196 = vsel %vm1195, %v1187, %v1192
        %v1197 = vrsqrt.pop %v1045
        %v1198 = vmul.f32 %v1197, %v1045
        %v1199 = vmul.f32 %v1198, %v1197
        %v1200 = vmul.f32 0.5, %v1199
        %v1201 = vsub.f32 1.5, %v1200
        %v1202 = vmul.f32 %v1197, %v1201
        %vm1203 = vweird.f32 %v1045
        %vm1204 = vweird.f32 %v1197
        %vm1205 = vmor %vm1203, %vm1204
        %v1206 = vsel %vm1205, %v1197, %v1202
        %v1207 = vmul.f32 %v950, %v1056
        %v1208 = vmul.f32 %v951, %v1066
        %v1209 = vmul.f32 %v952, %v1076
        %v1210 = vmul.f32 %v953, %v1086
        %v1211 = vmul.f32 %v954, %v1096
        %v1212 = vmul.f32 %v955, %v1106
        %v1213 = vmul.f32 %v956, %v1116
        %v1214 = vmul.f32 %v957, %v1126
        %v1215 = vmul.f32 %v958, %v1136
        %v1216 = vmul.f32 %v959, %v1146
        %v1217 = vmul.f32 %v960, %v1156
        %v1218 = vmul.f32 %v961, %v1166
        %v1219 = vmul.f32 %v962, %v1176
        %v1220 = vmul.f32 %v963, %v1186
        %v1221 = vmul.f32 %v964, %v1196
        %v1222 = vmul.f32 %v965, %v1206
        %v1223 = vperm.slane %v694, 3
        %v1224 = vmul.f32 %v1207, %v1223
        %v1225 = vmul.f32 %v1208, %v1223
        %v1226 = vmul.f32 %v1209, %v1223
        %v1227 = vmul.f32 %v1210, %v1223
        %v1228 = vmul.f32 %v1211, %v1223
        %v1229 = vmul.f32 %v1212, %v1223
        %v1230 = vmul.f32 %v1213, %v1223
        %v1231 = vmul.f32 %v1214, %v1223
        %v1232 = vperm.slane %v694, 4
        %v1233 = vadd.f32 %v1224, %v1232
        %v1234 = vadd.f32 %v1225, %v1232
        %v1235 = vadd.f32 %v1226, %v1232
        %v1236 = vadd.f32 %v1227, %v1232
        %v1237 = vadd.f32 %v1228, %v1232
        %v1238 = vadd.f32 %v1229, %v1232
        %v1239 = vadd.f32 %v1230, %v1232
        %v1240 = vadd.f32 %v1231, %v1232
        %v1241 = vperm.slane %v694, 5
        %v1242 = vmul.f32 %v1215, %v1241
        %v1243 = vmul.f32 %v1216, %v1241
        %v1244 = vmul.f32 %v1217, %v1241
        %v1245 = vmul.f32 %v1218, %v1241
        %v1246 = vmul.f32 %v1219, %v1241
        %v1247 = vmul.f32 %v1220, %v1241
        %v1248 = vmul.f32 %v1221, %v1241
        %v1249 = vmul.f32 %v1222, %v1241
        %v1250 = vperm.slane %v694, 6
        %v1251 = vadd.f32 %v1242, %v1250
        %v1252 = vadd.f32 %v1243, %v1250
        %v1253 = vadd.f32 %v1244, %v1250
        %v1254 = vadd.f32 %v1245, %v1250
        %v1255 = vadd.f32 %v1246, %v1250
        %v1256 = vadd.f32 %v1247, %v1250
        %v1257 = vadd.f32 %v1248, %v1250
        %v1258 = vadd.f32 %v1249, %v1250
        %1259 = vxpose.xlu0.b32.start [1/16] %v1233, 128
        %1260 = vxpose.xlu0.b32.cont [2/16] %v1234, 128
        %1261 = vxpose.xlu0.b32.cont [3/16] %v1235, 128
        %1262 = vxpose.xlu0.b32.cont [4/16] %v1236, 128
        %1263 = vxpose.xlu0.b32.cont [5/16] %v1237, 128
        %1264 = vxpose.xlu0.b32.cont [6/16] %v1238, 128
        %1265 = vxpose.xlu0.b32.cont [7/16] %v1239, 128
        %1266 = vxpose.xlu0.b32.cont [8/16] %v1240, 128
        %1267 = vxpose.xlu0.b32.cont [9/16] 0.0, 128
        %1268 = vxpose.xlu0.b32.cont [10/16] 0.0, 128
        %1269 = vxpose.xlu0.b32.cont [11/16] 0.0, 128
        %1270 = vxpose.xlu0.b32.cont [12/16] 0.0, 128
        %1271 = vxpose.xlu0.b32.cont [13/16] 0.0, 128
        %1272 = vxpose.xlu0.b32.cont [14/16] 0.0, 128
        %1273 = vxpose.xlu0.b32.cont [15/16] 0.0, 128
        %1274 = vxpose.xlu0.b32.end [16/16] 0.0, 128
        %v1275 = vpop.trf.xlu0
        %v1276 = vpop.trf.xlu0
        %v1277 = vpop.trf.xlu0
        %v1278 = vpop.trf.xlu0
        %v1279 = vpop.trf.xlu0
        %v1280 = vpop.trf.xlu0
        %v1281 = vpop.trf.xlu0
        %v1282 = vpop.trf.xlu0
        %v1283 = vpop.trf.xlu0
        %v1284 = vpop.trf.xlu0
        %v1285 = vpop.trf.xlu0
        %v1286 = vpop.trf.xlu0
        %v1287 = vpop.trf.xlu0
        %v1288 = vpop.trf.xlu0
        %v1289 = vpop.trf.xlu0
        %v1290 = vpop.trf.xlu0
        %vm1291 = vcmask 523264
        %v1293 = vsel %vm1291, %v1275, 0
        %v1296 = vsel %vm1291, %v1276, 0
        %v1299 = vsel %vm1291, %v1277, 0
        %v1302 = vsel %vm1291, %v1278, 0
        %v1305 = vsel %vm1291, %v1279, 0
        %v1308 = vsel %vm1291, %v1280, 0
        %v1311 = vsel %vm1291, %v1281, 0
        %v1314 = vsel %vm1291, %v1282, 0
        %v1317 = vsel %vm1291, %v1283, 0
        %v1320 = vsel %vm1291, %v1284, 0
        %v1323 = vsel %vm1291, %v1285, 0
        %v1326 = vsel %vm1291, %v1286, 0
        %v1329 = vsel %vm1291, %v1287, 0
        %v1332 = vsel %vm1291, %v1288, 0
        %v1335 = vsel %vm1291, %v1289, 0
        %v1338 = vsel %vm1291, %v1290, 0
        %1340 = vmatpush.msra.mxu0 0.0
        %1341 = vmatpush.msra.mxu0 0.0
        %1342 = vmatpush.msra.mxu0 0.0
        %1343 = vmatpush.msra.mxu0 0.0
        %1344 = vmatpush.msra.mxu0 0.0
        %1345 = vmatpush.msra.mxu0 0.0
        %1346 = vmatpush.msra.mxu0 0.0
        %1347 = vmatpush.msra.mxu0 0.0
        %1348 = vmatpush.msra.mxu0 %v1258
        %1349 = vmatpush.msra.mxu0 %v1257
        %1350 = vmatpush.msra.mxu0 %v1256
        %1351 = vmatpush.msra.mxu0 %v1255
        %1352 = vmatpush.msra.mxu0 %v1254
        %1353 = vmatpush.msra.mxu0 %v1253
        %1354 = vmatpush.msra.mxu0 %v1252
        %1355 = vmatpush.msra.mxu0 %v1251
        %1356 = vmatmul.f32.gmra.mxu0 %v1293
        %v1357 = vpop.f32.mrf.mxu0
        %v1358 = vadd.f32 0.0, %v1357
        %1359 = vmatmul.f32.gmra.mxu0 %v1296
        %v1360 = vpop.f32.mrf.mxu0
        %v1361 = vadd.f32 0.0, %v1360
        %1362 = vmatmul.f32.gmra.mxu0 %v1299
        %v1363 = vpop.f32.mrf.mxu0
        %v1364 = vadd.f32 0.0, %v1363
        %1365 = vmatmul.f32.gmra.mxu0 %v1302
        %v1366 = vpop.f32.mrf.mxu0
        %v1367 = vadd.f32 0.0, %v1366
        %1368 = vmatmul.f32.gmra.mxu0 %v1305
        %v1369 = vpop.f32.mrf.mxu0
        %v1370 = vadd.f32 0.0, %v1369
        %1371 = vmatmul.f32.gmra.mxu0 %v1308
        %v1372 = vpop.f32.mrf.mxu0
        %v1373 = vadd.f32 0.0, %v1372
        %1374 = vmatmul.f32.gmra.mxu0 %v1311
        %v1375 = vpop.f32.mrf.mxu0
        %v1376 = vadd.f32 0.0, %v1375
        %1377 = vmatmul.f32.gmra.mxu0 %v1314
        %v1378 = vpop.f32.mrf.mxu0
        %v1379 = vadd.f32 0.0, %v1378
        %1380 = vmatmul.f32.gmra.mxu0 %v1317
        %v1381 = vpop.f32.mrf.mxu0
        %v1382 = vadd.f32 0.0, %v1381
        %1383 = vmatmul.f32.gmra.mxu0 %v1320
        %v1384 = vpop.f32.mrf.mxu0
        %v1385 = vadd.f32 0.0, %v1384
        %1386 = vmatmul.f32.gmra.mxu0 %v1323
        %v1387 = vpop.f32.mrf.mxu0
        %v1388 = vadd.f32 0.0, %v1387
        %1389 = vmatmul.f32.gmra.mxu0 %v1326
        %v1390 = vpop.f32.mrf.mxu0
        %v1391 = vadd.f32 0.0, %v1390
        %1392 = vmatmul.f32.gmra.mxu0 %v1329
        %v1393 = vpop.f32.mrf.mxu0
        %v1394 = vadd.f32 0.0, %v1393
        %1395 = vmatmul.f32.gmra.mxu0 %v1332
        %v1396 = vpop.f32.mrf.mxu0
        %v1397 = vadd.f32 0.0, %v1396
        %1398 = vmatmul.f32.gmra.mxu0 %v1335
        %v1399 = vpop.f32.mrf.mxu0
        %v1400 = vadd.f32 0.0, %v1399
        %1401 = vmatmul.f32.gmra.mxu0 %v1338
        %v1402 = vpop.f32.mrf.mxu0
        %v1403 = vadd.f32 0.0, %v1402
        %1404 = vdwg.mxu0
        %v1405 = vld [vmem:[#allocation11] sm:$0xff]
        %v1406 = vld [vmem:[#allocation11 + $0x8] sm:$0xff]
        %v1407 = vld [vmem:[#allocation11 + $0x10] sm:$0xff]
        %v1408 = vld [vmem:[#allocation11 + $0x18] sm:$0xff]
        %v1409 = vld [vmem:[#allocation11 + $0x20] sm:$0xff]
        %v1410 = vld [vmem:[#allocation11 + $0x28] sm:$0xff]
        %v1411 = vld [vmem:[#allocation11 + $0x30] sm:$0xff]
        %v1412 = vld [vmem:[#allocation11 + $0x38] sm:$0xff]
        %v1413 = vld [vmem:[#allocation11 + $0x40] sm:$0xff]
        %v1414 = vld [vmem:[#allocation11 + $0x48] sm:$0xff]
        %v1415 = vld [vmem:[#allocation11 + $0x50] sm:$0xff]
        %v1416 = vld [vmem:[#allocation11 + $0x58] sm:$0xff]
        %v1417 = vld [vmem:[#allocation11 + $0x60] sm:$0xff]
        %v1418 = vld [vmem:[#allocation11 + $0x68] sm:$0xff]
        %v1419 = vld [vmem:[#allocation11 + $0x70] sm:$0xff]
        %v1420 = vld [vmem:[#allocation11 + $0x78] sm:$0xff]
        %v1421 = vmul.f32 %v1358, %v1405
        %v1422 = vmul.f32 %v1361, %v1406
        %v1423 = vmul.f32 %v1364, %v1407
        %v1424 = vmul.f32 %v1367, %v1408
        %v1425 = vmul.f32 %v1370, %v1409
        %v1426 = vmul.f32 %v1373, %v1410
        %v1427 = vmul.f32 %v1376, %v1411
        %v1428 = vmul.f32 %v1379, %v1412
        %v1429 = vmul.f32 %v1382, %v1413
        %v1430 = vmul.f32 %v1385, %v1414
        %v1431 = vmul.f32 %v1388, %v1415
        %v1432 = vmul.f32 %v1391, %v1416
        %v1433 = vmul.f32 %v1394, %v1417
        %v1434 = vmul.f32 %v1397, %v1418
        %v1435 = vmul.f32 %v1400, %v1419
        %v1436 = vmul.f32 %v1403, %v1420
        %1437 = vxpose.xlu0.b32.start [1/16] %v686, 128
        %1438 = vxpose.xlu0.b32.cont [2/16] %v687, 128
        %1439 = vxpose.xlu0.b32.cont [3/16] %v688, 128
        %1440 = vxpose.xlu0.b32.cont [4/16] %v689, 128
        %1441 = vxpose.xlu0.b32.cont [5/16] %v690, 128
        %1442 = vxpose.xlu0.b32.cont [6/16] %v691, 128
        %1443 = vxpose.xlu0.b32.cont [7/16] %v692, 128
        %1444 = vxpose.xlu0.b32.cont [8/16] %v693, 128
        %1445 = vxpose.xlu0.b32.cont [9/16] 0.0, 128
        %1446 = vxpose.xlu0.b32.cont [10/16] 0.0, 128
        %1447 = vxpose.xlu0.b32.cont [11/16] 0.0, 128
        %1448 = vxpose.xlu0.b32.cont [12/16] 0.0, 128
        %1449 = vxpose.xlu0.b32.cont [13/16] 0.0, 128
        %1450 = vxpose.xlu0.b32.cont [14/16] 0.0, 128
        %1451 = vxpose.xlu0.b32.cont [15/16] 0.0, 128
        %1452 = vxpose.xlu0.b32.end [16/16] 0.0, 128
        %v1453 = vpop.trf.xlu0
        %v1454 = vpop.trf.xlu0
        %v1455 = vpop.trf.xlu0
        %v1456 = vpop.trf.xlu0
        %v1457 = vpop.trf.xlu0
        %v1458 = vpop.trf.xlu0
        %v1459 = vpop.trf.xlu0
        %v1460 = vpop.trf.xlu0
        %v1461 = vpop.trf.xlu0
        %v1462 = vpop.trf.xlu0
        %v1463 = vpop.trf.xlu0
        %v1464 = vpop.trf.xlu0
        %v1465 = vpop.trf.xlu0
        %v1466 = vpop.trf.xlu0
        %v1467 = vpop.trf.xlu0
        %v1468 = vpop.trf.xlu0
        %v1470 = vsel %vm1291, %v1453, 0
        %1472 = vmatpush.msra.mxu0 0.0
        %1473 = vmatpush.msra.mxu0 0.0
        %1474 = vmatpush.msra.mxu0 0.0
        %1475 = vmatpush.msra.mxu0 0.0
        %1476 = vmatpush.msra.mxu0 0.0
        %1477 = vmatpush.msra.mxu0 0.0
        %1478 = vmatpush.msra.mxu0 0.0
        %1479 = vmatpush.msra.mxu0 0.0
        %1480 = vmatpush.msra.mxu0 %v1258
        %1481 = vmatpush.msra.mxu0 %v1257
        %1482 = vmatpush.msra.mxu0 %v1256
        %1483 = vmatpush.msra.mxu0 %v1255
        %1484 = vmatpush.msra.mxu0 %v1254
        %1485 = vmatpush.msra.mxu0 %v1253
        %1486 = vmatpush.msra.mxu0 %v1252
        %1487 = vmatpush.msra.mxu0 %v1251
        %1488 = vmatmul.f32.gmra.mxu0 %v1470
        %v1489 = vpop.f32.mrf.mxu0
        %v1490 = vadd.f32 0.0, %v1489
        %1491 = vdwg.mxu0
        %1492 = vmatpush.msra.mxu0 0.0
        %1493 = vmatpush.msra.mxu0 0.0
        %1494 = vmatpush.msra.mxu0 0.0
        %1495 = vmatpush.msra.mxu0 0.0
        %1496 = vmatpush.msra.mxu0 0.0
        %1497 = vmatpush.msra.mxu0 0.0
        %1498 = vmatpush.msra.mxu0 0.0
        %1499 = vmatpush.msra.mxu0 0.0
        %1500 = vmatpush.msra.mxu0 %v693
        %1501 = vmatpush.msra.mxu0 %v692
        %1502 = vmatpush.msra.mxu0 %v691
        %1503 = vmatpush.msra.mxu0 %v690
        %1504 = vmatpush.msra.mxu0 %v689
        %1505 = vmatpush.msra.mxu0 %v688
        %1506 = vmatpush.msra.mxu0 %v687
        %1507 = vmatpush.msra.mxu0 %v686
        %1508 = vmatmul.f32.gmra.mxu0 %v1293
        %v1509 = vpop.f32.mrf.mxu0
        %v1510 = vadd.f32 0.0, %v1509
        %1511 = vmatmul.f32.gmra.mxu0 %v1296
        %v1512 = vpop.f32.mrf.mxu0
        %v1513 = vadd.f32 0.0, %v1512
        %1514 = vmatmul.f32.gmra.mxu0 %v1299
        %v1515 = vpop.f32.mrf.mxu0
        %v1516 = vadd.f32 0.0, %v1515
        %1517 = vmatmul.f32.gmra.mxu0 %v1302
        %v1518 = vpop.f32.mrf.mxu0
        %v1519 = vadd.f32 0.0, %v1518
        %1520 = vmatmul.f32.gmra.mxu0 %v1305
        %v1521 = vpop.f32.mrf.mxu0
        %v1522 = vadd.f32 0.0, %v1521
        %1523 = vmatmul.f32.gmra.mxu0 %v1308
        %v1524 = vpop.f32.mrf.mxu0
        %v1525 = vadd.f32 0.0, %v1524
        %1526 = vmatmul.f32.gmra.mxu0 %v1311
        %v1527 = vpop.f32.mrf.mxu0
        %v1528 = vadd.f32 0.0, %v1527
        %1529 = vmatmul.f32.gmra.mxu0 %v1314
        %v1530 = vpop.f32.mrf.mxu0
        %v1531 = vadd.f32 0.0, %v1530
        %1532 = vmatmul.f32.gmra.mxu0 %v1317
        %v1533 = vpop.f32.mrf.mxu0
        %v1534 = vadd.f32 0.0, %v1533
        %1535 = vmatmul.f32.gmra.mxu0 %v1320
        %v1536 = vpop.f32.mrf.mxu0
        %v1537 = vadd.f32 0.0, %v1536
        %1538 = vmatmul.f32.gmra.mxu0 %v1323
        %v1539 = vpop.f32.mrf.mxu0
        %v1540 = vadd.f32 0.0, %v1539
        %1541 = vmatmul.f32.gmra.mxu0 %v1326
        %v1542 = vpop.f32.mrf.mxu0
        %v1543 = vadd.f32 0.0, %v1542
        %1544 = vmatmul.f32.gmra.mxu0 %v1329
        %v1545 = vpop.f32.mrf.mxu0
        %v1546 = vadd.f32 0.0, %v1545
        %1547 = vmatmul.f32.gmra.mxu0 %v1332
        %v1548 = vpop.f32.mrf.mxu0
        %v1549 = vadd.f32 0.0, %v1548
        %1550 = vmatmul.f32.gmra.mxu0 %v1335
        %v1551 = vpop.f32.mrf.mxu0
        %v1552 = vadd.f32 0.0, %v1551
        %1553 = vmatmul.f32.gmra.mxu0 %v1338
        %v1554 = vpop.f32.mrf.mxu0
        %v1555 = vadd.f32 0.0, %v1554
        %1556 = vdwg.mxu0
        %1557 = vmatpush.msra.mxu0 0.0
        %1558 = vmatpush.msra.mxu0 0.0
        %1559 = vmatpush.msra.mxu0 0.0
        %1560 = vmatpush.msra.mxu0 0.0
        %1561 = vmatpush.msra.mxu0 0.0
        %1562 = vmatpush.msra.mxu0 0.0
        %1563 = vmatpush.msra.mxu0 0.0
        %1564 = vmatpush.msra.mxu0 0.0
        %1565 = vmatpush.msra.mxu0 %v693
        %1566 = vmatpush.msra.mxu0 %v692
        %1567 = vmatpush.msra.mxu0 %v691
        %1568 = vmatpush.msra.mxu0 %v690
        %1569 = vmatpush.msra.mxu0 %v689
        %1570 = vmatpush.msra.mxu0 %v688
        %1571 = vmatpush.msra.mxu0 %v687
        %1572 = vmatpush.msra.mxu0 %v686
        %1573 = vmatmul.f32.gmra.mxu0 %v1470
        %v1574 = vpop.f32.mrf.mxu0
        %v1575 = vadd.f32 0.0, %v1574
        %1576 = vdwg.mxu0
        %1593 = vrot.lane.b32.xlu0 %v1510, 2
        %v1594 = vpop.permute.xlu0 %1593
        %1595 = vrot.lane.b32.xlu0 %v1513, 2
        %v1596 = vpop.permute.xlu0 %1595
        %1597 = vrot.lane.b32.xlu0 %v1516, 2
        %v1598 = vpop.permute.xlu0 %1597
        %1599 = vrot.lane.b32.xlu0 %v1519, 2
        %v1600 = vpop.permute.xlu0 %1599
        %1601 = vrot.lane.b32.xlu0 %v1522, 2
        %v1602 = vpop.permute.xlu0 %1601
        %1603 = vrot.lane.b32.xlu0 %v1525, 2
        %v1604 = vpop.permute.xlu0 %1603
        %1605 = vrot.lane.b32.xlu0 %v1528, 2
        %v1606 = vpop.permute.xlu0 %1605
        %1607 = vrot.lane.b32.xlu0 %v1531, 2
        %v1608 = vpop.permute.xlu0 %1607
        %1609 = vrot.lane.b32.xlu0 %v1534, 2
        %v1610 = vpop.permute.xlu0 %1609
        %1611 = vrot.lane.b32.xlu0 %v1537, 2
        %v1612 = vpop.permute.xlu0 %1611
        %1613 = vrot.lane.b32.xlu0 %v1540, 2
        %v1614 = vpop.permute.xlu0 %1613
        %1615 = vrot.lane.b32.xlu0 %v1543, 2
        %v1616 = vpop.permute.xlu0 %1615
        %1617 = vrot.lane.b32.xlu0 %v1546, 2
        %v1618 = vpop.permute.xlu0 %1617
        %1619 = vrot.lane.b32.xlu0 %v1549, 2
        %v1620 = vpop.permute.xlu0 %1619
        %1621 = vrot.lane.b32.xlu0 %v1552, 2
        %v1622 = vpop.permute.xlu0 %1621
        %1623 = vrot.lane.b32.xlu0 %v1555, 2
        %v1624 = vpop.permute.xlu0 %1623
        %1641 = vrot.lane.b32.xlu0 %v1510, 4
        %v1642 = vpop.permute.xlu0 %1641
        %1643 = vrot.lane.b32.xlu0 %v1513, 4
        %v1644 = vpop.permute.xlu0 %1643
        %1645 = vrot.lane.b32.xlu0 %v1516, 4
        %v1646 = vpop.permute.xlu0 %1645
        %1647 = vrot.lane.b32.xlu0 %v1519, 4
        %v1648 = vpop.permute.xlu0 %1647
        %1649 = vrot.lane.b32.xlu0 %v1522, 4
        %v1650 = vpop.permute.xlu0 %1649
        %1651 = vrot.lane.b32.xlu0 %v1525, 4
        %v1652 = vpop.permute.xlu0 %1651
        %1653 = vrot.lane.b32.xlu0 %v1528, 4
        %v1654 = vpop.permute.xlu0 %1653
        %1655 = vrot.lane.b32.xlu0 %v1531, 4
        %v1656 = vpop.permute.xlu0 %1655
        %1657 = vrot.lane.b32.xlu0 %v1534, 4
        %v1658 = vpop.permute.xlu0 %1657
        %1659 = vrot.lane.b32.xlu0 %v1537, 4
        %v1660 = vpop.permute.xlu0 %1659
        %1661 = vrot.lane.b32.xlu0 %v1540, 4
        %v1662 = vpop.permute.xlu0 %1661
        %1663 = vrot.lane.b32.xlu0 %v1543, 4
        %v1664 = vpop.permute.xlu0 %1663
        %1665 = vrot.lane.b32.xlu0 %v1546, 4
        %v1666 = vpop.permute.xlu0 %1665
        %1667 = vrot.lane.b32.xlu0 %v1549, 4
        %v1668 = vpop.permute.xlu0 %1667
        %1669 = vrot.lane.b32.xlu0 %v1552, 4
        %v1670 = vpop.permute.xlu0 %1669
        %1671 = vrot.lane.b32.xlu0 %v1555, 4
        %v1672 = vpop.permute.xlu0 %1671
        %1689 = vrot.lane.b32.xlu0 %v1510, 6
        %v1690 = vpop.permute.xlu0 %1689
        %1691 = vrot.lane.b32.xlu0 %v1513, 6
        %v1692 = vpop.permute.xlu0 %1691
        %1693 = vrot.lane.b32.xlu0 %v1516, 6
        %v1694 = vpop.permute.xlu0 %1693
        %1695 = vrot.lane.b32.xlu0 %v1519, 6
        %v1696 = vpop.permute.xlu0 %1695
        %1697 = vrot.lane.b32.xlu0 %v1522, 6
        %v1698 = vpop.permute.xlu0 %1697
        %1699 = vrot.lane.b32.xlu0 %v1525, 6
        %v1700 = vpop.permute.xlu0 %1699
        %1701 = vrot.lane.b32.xlu0 %v1528, 6
        %v1702 = vpop.permute.xlu0 %1701
        %1703 = vrot.lane.b32.xlu0 %v1531, 6
        %v1704 = vpop.permute.xlu0 %1703
        %1705 = vrot.lane.b32.xlu0 %v1534, 6
        %v1706 = vpop.permute.xlu0 %1705
        %1707 = vrot.lane.b32.xlu0 %v1537, 6
        %v1708 = vpop.permute.xlu0 %1707
        %1709 = vrot.lane.b32.xlu0 %v1540, 6
        %v1710 = vpop.permute.xlu0 %1709
        %1711 = vrot.lane.b32.xlu0 %v1543, 6
        %v1712 = vpop.permute.xlu0 %1711
        %1713 = vrot.lane.b32.xlu0 %v1546, 6
        %v1714 = vpop.permute.xlu0 %1713
        %1715 = vrot.lane.b32.xlu0 %v1549, 6
        %v1716 = vpop.permute.xlu0 %1715
        %1717 = vrot.lane.b32.xlu0 %v1552, 6
        %v1718 = vpop.permute.xlu0 %1717
        %1719 = vrot.lane.b32.xlu0 %v1555, 6
        %v1720 = vpop.permute.xlu0 %1719
        %vm1737 = vcmask 15360
        %v1738 = vsel %vm1737, %v1510, %v1594
        %v1739 = vsel %vm1737, %v1513, %v1596
        %v1740 = vsel %vm1737, %v1516, %v1598
        %v1741 = vsel %vm1737, %v1519, %v1600
        %v1742 = vsel %vm1737, %v1522, %v1602
        %v1743 = vsel %vm1737, %v1525, %v1604
        %v1744 = vsel %vm1737, %v1528, %v1606
        %v1745 = vsel %vm1737, %v1531, %v1608
        %v1746 = vsel %vm1737, %v1534, %v1610
        %v1747 = vsel %vm1737, %v1537, %v1612
        %v1748 = vsel %vm1737, %v1540, %v1614
        %v1749 = vsel %vm1737, %v1543, %v1616
        %v1750 = vsel %vm1737, %v1546, %v1618
        %v1751 = vsel %vm1737, %v1549, %v1620
        %v1752 = vsel %vm1737, %v1552, %v1622
        %v1753 = vsel %vm1737, %v1555, %v1624
        %vm1754 = vcmask 31744
        %v1755 = vsel %vm1754, %v1738, %v1642
        %v1756 = vsel %vm1754, %v1739, %v1644
        %v1757 = vsel %vm1754, %v1740, %v1646
        %v1758 = vsel %vm1754, %v1741, %v1648
        %v1759 = vsel %vm1754, %v1742, %v1650
        %v1760 = vsel %vm1754, %v1743, %v1652
        %v1761 = vsel %vm1754, %v1744, %v1654
        %v1762 = vsel %vm1754, %v1745, %v1656
        %v1763 = vsel %vm1754, %v1746, %v1658
        %v1764 = vsel %vm1754, %v1747, %v1660
        %v1765 = vsel %vm1754, %v1748, %v1662
        %v1766 = vsel %vm1754, %v1749, %v1664
        %v1767 = vsel %vm1754, %v1750, %v1666
        %v1768 = vsel %vm1754, %v1751, %v1668
        %v1769 = vsel %vm1754, %v1752, %v1670
        %v1770 = vsel %vm1754, %v1753, %v1672
        %vm1771 = vcmask 48128
        %v1772 = vsel %vm1771, %v1755, %v1690
        %v1773 = vsel %vm1771, %v1756, %v1692
        %v1774 = vsel %vm1771, %v1757, %v1694
        %v1775 = vsel %vm1771, %v1758, %v1696
        %v1776 = vsel %vm1771, %v1759, %v1698
        %v1777 = vsel %vm1771, %v1760, %v1700
        %v1778 = vsel %vm1771, %v1761, %v1702
        %v1779 = vsel %vm1771, %v1762, %v1704
        %v1780 = vsel %vm1771, %v1763, %v1706
        %v1781 = vsel %vm1771, %v1764, %v1708
        %v1782 = vsel %vm1771, %v1765, %v1710
        %v1783 = vsel %vm1771, %v1766, %v1712
        %v1784 = vsel %vm1771, %v1767, %v1714
        %v1785 = vsel %vm1771, %v1768, %v1716
        %v1786 = vsel %vm1771, %v1769, %v1718
        %v1787 = vsel %vm1771, %v1770, %v1720
        %v1788 = vld [vmem:[%s10] sm:$0xff]
        %v1789 = vld [vmem:[%s10 + $0x8] sm:$0xff]
        %v1790 = vld [vmem:[%s10 + $0x10] sm:$0xff]
        %v1791 = vld [vmem:[%s10 + $0x18] sm:$0xff]
        %v1792 = vld [vmem:[%s10 + $0x20] sm:$0xff]
        %v1793 = vld [vmem:[%s10 + $0x28] sm:$0xff]
        %v1794 = vld [vmem:[%s10 + $0x30] sm:$0xff]
        %v1795 = vld [vmem:[%s10 + $0x38] sm:$0xff]
        %v1796 = vld [vmem:[%s10 + $0x40] sm:$0xff]
        %v1797 = vld [vmem:[%s10 + $0x48] sm:$0xff]
        %v1798 = vld [vmem:[%s10 + $0x50] sm:$0xff]
        %v1799 = vld [vmem:[%s10 + $0x58] sm:$0xff]
        %v1800 = vld [vmem:[%s10 + $0x60] sm:$0xff]
        %v1801 = vld [vmem:[%s10 + $0x68] sm:$0xff]
        %v1802 = vld [vmem:[%s10 + $0x70] sm:$0xff]
        %v1803 = vld [vmem:[%s10 + $0x78] sm:$0xff]
        %v1804 = vmul.f32 %v1772, %v1788
        %v1805 = vmul.f32 %v1773, %v1789
        %v1806 = vmul.f32 %v1774, %v1790
        %v1807 = vmul.f32 %v1775, %v1791
        %v1808 = vmul.f32 %v1776, %v1792
        %v1809 = vmul.f32 %v1777, %v1793
        %v1810 = vmul.f32 %v1778, %v1794
        %v1811 = vmul.f32 %v1779, %v1795
        %v1812 = vmul.f32 %v1780, %v1796
        %v1813 = vmul.f32 %v1781, %v1797
        %v1814 = vmul.f32 %v1782, %v1798
        %v1815 = vmul.f32 %v1783, %v1799
        %v1816 = vmul.f32 %v1784, %v1800
        %v1817 = vmul.f32 %v1785, %v1801
        %v1818 = vmul.f32 %v1786, %v1802
        %v1819 = vmul.f32 %v1787, %v1803
        %v1820 = vld [vmem:[#allocation13] sm:$0xff]
        %v1821 = vld [vmem:[#allocation13 + $0x8] sm:$0xff]
        %v1822 = vld [vmem:[#allocation13 + $0x10] sm:$0xff]
        %v1823 = vld [vmem:[#allocation13 + $0x18] sm:$0xff]
        %v1824 = vld [vmem:[#allocation13 + $0x20] sm:$0xff]
        %v1825 = vld [vmem:[#allocation13 + $0x28] sm:$0xff]
        %v1826 = vld [vmem:[#allocation13 + $0x30] sm:$0xff]
        %v1827 = vld [vmem:[#allocation13 + $0x38] sm:$0xff]
        %v1828 = vld [vmem:[#allocation13 + $0x40] sm:$0xff]
        %v1829 = vld [vmem:[#allocation13 + $0x48] sm:$0xff]
        %v1830 = vld [vmem:[#allocation13 + $0x50] sm:$0xff]
        %v1831 = vld [vmem:[#allocation13 + $0x58] sm:$0xff]
        %v1832 = vld [vmem:[#allocation13 + $0x60] sm:$0xff]
        %v1833 = vld [vmem:[#allocation13 + $0x68] sm:$0xff]
        %v1834 = vld [vmem:[#allocation13 + $0x70] sm:$0xff]
        %v1835 = vld [vmem:[#allocation13 + $0x78] sm:$0xff]
        %v1836 = vld [vmem:[#allocation14] sm:$0xff]
        %v1837 = vld [vmem:[%s13] sm:$0x3]
        %1839 = vset.pattern.permute.xlu0 0
        %1840 = vperm.xlu0 %1839, %v686
        %v1841 = vpop.permute.xlu0 %1840
        %1844 = vset.pattern.permute.xlu0 0
        %1845 = vperm.xlu0 %1844, %v687
        %v1846 = vpop.permute.xlu0 %1845
        %1849 = vset.pattern.permute.xlu0 0
        %1850 = vperm.xlu0 %1849, %v688
        %v1851 = vpop.permute.xlu0 %1850
        %1854 = vset.pattern.permute.xlu0 0
        %1855 = vperm.xlu0 %1854, %v689
        %v1856 = vpop.permute.xlu0 %1855
        %1859 = vset.pattern.permute.xlu0 0
        %1860 = vperm.xlu0 %1859, %v690
        %v1861 = vpop.permute.xlu0 %1860
        %1864 = vset.pattern.permute.xlu0 0
        %1865 = vperm.xlu0 %1864, %v691
        %v1866 = vpop.permute.xlu0 %1865
        %1869 = vset.pattern.permute.xlu0 0
        %1870 = vperm.xlu0 %1869, %v692
        %v1871 = vpop.permute.xlu0 %1870
        %1874 = vset.pattern.permute.xlu0 0
        %1875 = vperm.xlu0 %1874, %v693
        %v1876 = vpop.permute.xlu0 %1875
        %v1878 = vperm.slane %v1490, 0
        %v1879 = vmul.f32 %v1841, %v1878
        %v1880 = vmul.f32 %v1846, %v1878
        %v1881 = vmul.f32 %v1851, %v1878
        %v1882 = vmul.f32 %v1856, %v1878
        %v1883 = vmul.f32 %v1861, %v1878
        %v1884 = vmul.f32 %v1866, %v1878
        %v1885 = vmul.f32 %v1871, %v1878
        %v1886 = vmul.f32 %v1876, %v1878
        %1887 = vset.pattern.permute.xlu0 1
        %1888 = vperm.xlu0 %1887, %v686
        %v1889 = vpop.permute.xlu0 %1888
        %1891 = vset.pattern.permute.xlu0 1
        %1892 = vperm.xlu0 %1891, %v687
        %v1893 = vpop.permute.xlu0 %1892
        %1895 = vset.pattern.permute.xlu0 1
        %1896 = vperm.xlu0 %1895, %v688
        %v1897 = vpop.permute.xlu0 %1896
        %1899 = vset.pattern.permute.xlu0 1
        %1900 = vperm.xlu0 %1899, %v689
        %v1901 = vpop.permute.xlu0 %1900
        %1903 = vset.pattern.permute.xlu0 1
        %1904 = vperm.xlu0 %1903, %v690
        %v1905 = vpop.permute.xlu0 %1904
        %1907 = vset.pattern.permute.xlu0 1
        %1908 = vperm.xlu0 %1907, %v691
        %v1909 = vpop.permute.xlu0 %1908
        %1911 = vset.pattern.permute.xlu0 1
        %1912 = vperm.xlu0 %1911, %v692
        %v1913 = vpop.permute.xlu0 %1912
        %1915 = vset.pattern.permute.xlu0 1
        %1916 = vperm.xlu0 %1915, %v693
        %v1917 = vpop.permute.xlu0 %1916
        %v1919 = vperm.slane %v1490, 1
        %v1920 = vmul.f32 %v1889, %v1919
        %v1921 = vmul.f32 %v1893, %v1919
        %v1922 = vmul.f32 %v1897, %v1919
        %v1923 = vmul.f32 %v1901, %v1919
        %v1924 = vmul.f32 %v1905, %v1919
        %v1925 = vmul.f32 %v1909, %v1919
        %v1926 = vmul.f32 %v1913, %v1919
        %v1927 = vmul.f32 %v1917, %v1919
        %v1928 = vadd.f32 %v1879, %v1920
        %v1929 = vadd.f32 %v1880, %v1921
        %v1930 = vadd.f32 %v1881, %v1922
        %v1931 = vadd.f32 %v1882, %v1923
        %v1932 = vadd.f32 %v1883, %v1924
        %v1933 = vadd.f32 %v1884, %v1925
        %v1934 = vadd.f32 %v1885, %v1926
        %v1935 = vadd.f32 %v1886, %v1927
        %v1936 = vmul.f32 %v1928, 0.015625
        %v1937 = vmul.f32 %v1929, 0.015625
        %v1938 = vmul.f32 %v1930, 0.015625
        %v1939 = vmul.f32 %v1931, 0.015625
        %v1940 = vmul.f32 %v1932, 0.015625
        %v1941 = vmul.f32 %v1933, 0.015625
        %v1942 = vmul.f32 %v1934, 0.015625
        %v1943 = vmul.f32 %v1935, 0.015625
        %1944 = vmatpush.msra.mxu0 %v1436
        %1945 = vmatpush.msra.mxu0 %v1435
        %1946 = vmatpush.msra.mxu0 %v1434
        %1947 = vmatpush.msra.mxu0 %v1433
        %1948 = vmatpush.msra.mxu0 %v1432
        %1949 = vmatpush.msra.mxu0 %v1431
        %1950 = vmatpush.msra.mxu0 %v1430
        %1951 = vmatpush.msra.mxu0 %v1429
        %1952 = vmatpush.msra.mxu0 %v1428
        %1953 = vmatpush.msra.mxu0 %v1427
        %1954 = vmatpush.msra.mxu0 %v1426
        %1955 = vmatpush.msra.mxu0 %v1425
        %1956 = vmatpush.msra.mxu0 %v1424
        %1957 = vmatpush.msra.mxu0 %v1423
        %1958 = vmatpush.msra.mxu0 %v1422
        %1959 = vmatpush.msra.mxu0 %v1421
        %1960 = vmatmul.f32.gmra.mxu0 %v730
        %v1961 = vpop.f32.mrf.mxu0
        %v1962 = vadd.f32 %v1936, %v1961
        %1963 = vmatmul.f32.gmra.mxu0 %v733
        %v1964 = vpop.f32.mrf.mxu0
        %v1965 = vadd.f32 %v1937, %v1964
        %1966 = vmatmul.f32.gmra.mxu0 %v736
        %v1967 = vpop.f32.mrf.mxu0
        %v1968 = vadd.f32 %v1938, %v1967
        %1969 = vmatmul.f32.gmra.mxu0 %v739
        %v1970 = vpop.f32.mrf.mxu0
        %v1971 = vadd.f32 %v1939, %v1970
        %1972 = vmatmul.f32.gmra.mxu0 %v742
        %v1973 = vpop.f32.mrf.mxu0
        %v1974 = vadd.f32 %v1940, %v1973
        %1975 = vmatmul.f32.gmra.mxu0 %v745
        %v1976 = vpop.f32.mrf.mxu0
        %v1977 = vadd.f32 %v1941, %v1976
        %1978 = vmatmul.f32.gmra.mxu0 %v748
        %v1979 = vpop.f32.mrf.mxu0
        %v1980 = vadd.f32 %v1942, %v1979
        %1981 = vmatmul.f32.gmra.mxu0 %v751
        %v1982 = vpop.f32.mrf.mxu0
        %v1983 = vadd.f32 %v1943, %v1982
        %1984 = vdwg.mxu0
        %1985 = vmatpush.msra.mxu0 %v1819
        %1986 = vmatpush.msra.mxu0 %v1818
        %1987 = vmatpush.msra.mxu0 %v1817
        %1988 = vmatpush.msra.mxu0 %v1816
        %1989 = vmatpush.msra.mxu0 %v1815
        %1990 = vmatpush.msra.mxu0 %v1814
        %1991 = vmatpush.msra.mxu0 %v1813
        %1992 = vmatpush.msra.mxu0 %v1812
        %1993 = vmatpush.msra.mxu0 %v1811
        %1994 = vmatpush.msra.mxu0 %v1810
        %1995 = vmatpush.msra.mxu0 %v1809
        %1996 = vmatpush.msra.mxu0 %v1808
        %1997 = vmatpush.msra.mxu0 %v1807
        %1998 = vmatpush.msra.mxu0 %v1806
        %1999 = vmatpush.msra.mxu0 %v1805
        %2000 = vmatpush.msra.mxu0 %v1804
        %2001 = vmatmul.f32.gmra.mxu0 %v730
        %v2002 = vpop.f32.mrf.mxu0
        %v2003 = vadd.f32 0.0, %v2002
        %2004 = vmatmul.f32.gmra.mxu0 %v733
        %v2005 = vpop.f32.mrf.mxu0
        %v2006 = vadd.f32 0.0, %v2005
        %2007 = vmatmul.f32.gmra.mxu0 %v736
        %v2008 = vpop.f32.mrf.mxu0
        %v2009 = vadd.f32 0.0, %v2008
        %2010 = vmatmul.f32.gmra.mxu0 %v739
        %v2011 = vpop.f32.mrf.mxu0
        %v2012 = vadd.f32 0.0, %v2011
        %2013 = vmatmul.f32.gmra.mxu0 %v742
        %v2014 = vpop.f32.mrf.mxu0
        %v2015 = vadd.f32 0.0, %v2014
        %2016 = vmatmul.f32.gmra.mxu0 %v745
        %v2017 = vpop.f32.mrf.mxu0
        %v2018 = vadd.f32 0.0, %v2017
        %2019 = vmatmul.f32.gmra.mxu0 %v748
        %v2020 = vpop.f32.mrf.mxu0
        %v2021 = vadd.f32 0.0, %v2020
        %2022 = vmatmul.f32.gmra.mxu0 %v751
        %v2023 = vpop.f32.mrf.mxu0
        %v2024 = vadd.f32 0.0, %v2023
        %2025 = vdwg.mxu0
        %v2026 = vperm.slane %v1575, 0
        %v2027 = vmul.f32 %v1841, %v2026
        %v2028 = vmul.f32 %v1846, %v2026
        %v2029 = vmul.f32 %v1851, %v2026
        %v2030 = vmul.f32 %v1856, %v2026
        %v2031 = vmul.f32 %v1861, %v2026
        %v2032 = vmul.f32 %v1866, %v2026
        %v2033 = vmul.f32 %v1871, %v2026
        %v2034 = vmul.f32 %v1876, %v2026
        %v2035 = vperm.slane %v1575, 1
        %v2036 = vmul.f32 %v1889, %v2035
        %v2037 = vmul.f32 %v1893, %v2035
        %v2038 = vmul.f32 %v1897, %v2035
        %v2039 = vmul.f32 %v1901, %v2035
        %v2040 = vmul.f32 %v1905, %v2035
        %v2041 = vmul.f32 %v1909, %v2035
        %v2042 = vmul.f32 %v1913, %v2035
        %v2043 = vmul.f32 %v1917, %v2035
        %v2044 = vadd.f32 %v2027, %v2036
        %v2045 = vadd.f32 %v2028, %v2037
        %v2046 = vadd.f32 %v2029, %v2038
        %v2047 = vadd.f32 %v2030, %v2039
        %v2048 = vadd.f32 %v2031, %v2040
        %v2049 = vadd.f32 %v2032, %v2041
        %v2050 = vadd.f32 %v2033, %v2042
        %v2051 = vadd.f32 %v2034, %v2043
        %v2052 = vmul.f32 %v2044, 0.015625
        %v2053 = vmul.f32 %v2045, 0.015625
        %v2054 = vmul.f32 %v2046, 0.015625
        %v2055 = vmul.f32 %v2047, 0.015625
        %v2056 = vmul.f32 %v2048, 0.015625
        %v2057 = vmul.f32 %v2049, 0.015625
        %v2058 = vmul.f32 %v2050, 0.015625
        %v2059 = vmul.f32 %v2051, 0.015625
        %vm2060 = vcmask 64512
        %v2062 = vsel %vm2060, %v2003, 0
        %v2065 = vsel %vm2060, %v2006, 0
        %v2068 = vsel %vm2060, %v2009, 0
        %v2071 = vsel %vm2060, %v2012, 0
        %v2074 = vsel %vm2060, %v2015, 0
        %v2077 = vsel %vm2060, %v2018, 0
        %v2080 = vsel %vm2060, %v2021, 0
        %v2083 = vsel %vm2060, %v2024, 0
        %2085 = vmatpush.msra.mxu0 0.0
        %2086 = vmatpush.msra.mxu0 0.0
        %2087 = vmatpush.msra.mxu0 0.0
        %2088 = vmatpush.msra.mxu0 0.0
        %2089 = vmatpush.msra.mxu0 0.0
        %2090 = vmatpush.msra.mxu0 0.0
        %2091 = vmatpush.msra.mxu0 0.0
        %2092 = vmatpush.msra.mxu0 0.0
        %2093 = vmatpush.msra.mxu0 0.0
        %2094 = vmatpush.msra.mxu0 0.0
        %2095 = vmatpush.msra.mxu0 0.0
        %2096 = vmatpush.msra.mxu0 0.0
        %2097 = vmatpush.msra.mxu0 0.0
        %2098 = vmatpush.msra.mxu0 0.0
        %2099 = vmatpush.msra.mxu0 0.0
        %2100 = vmatpush.msra.mxu0 %v1836
        %2101 = vmatmul.f32.gmra.mxu0 %v2062
        %v2102 = vpop.f32.mrf.mxu0
        %v2103 = vadd.f32 0.0, %v2102
        %2104 = vmatmul.f32.gmra.mxu0 %v2065
        %v2105 = vpop.f32.mrf.mxu0
        %v2106 = vadd.f32 0.0, %v2105
        %2107 = vmatmul.f32.gmra.mxu0 %v2068
        %v2108 = vpop.f32.mrf.mxu0
        %v2109 = vadd.f32 0.0, %v2108
        %2110 = vmatmul.f32.gmra.mxu0 %v2071
        %v2111 = vpop.f32.mrf.mxu0
        %v2112 = vadd.f32 0.0, %v2111
        %2113 = vmatmul.f32.gmra.mxu0 %v2074
        %v2114 = vpop.f32.mrf.mxu0
        %v2115 = vadd.f32 0.0, %v2114
        %2116 = vmatmul.f32.gmra.mxu0 %v2077
        %v2117 = vpop.f32.mrf.mxu0
        %v2118 = vadd.f32 0.0, %v2117
        %2119 = vmatmul.f32.gmra.mxu0 %v2080
        %v2120 = vpop.f32.mrf.mxu0
        %v2121 = vadd.f32 0.0, %v2120
        %2122 = vmatmul.f32.gmra.mxu0 %v2083
        %v2123 = vpop.f32.mrf.mxu0
        %v2124 = vadd.f32 0.0, %v2123
        %2125 = vdwg.mxu0
        %2126 = vmatpush.msra.mxu0 %v1835
        %2127 = vmatpush.msra.mxu0 %v1834
        %2128 = vmatpush.msra.mxu0 %v1833
        %2129 = vmatpush.msra.mxu0 %v1832
        %2130 = vmatpush.msra.mxu0 %v1831
        %2131 = vmatpush.msra.mxu0 %v1830
        %2132 = vmatpush.msra.mxu0 %v1829
        %2133 = vmatpush.msra.mxu0 %v1828
        %2134 = vmatpush.msra.mxu0 %v1827
        %2135 = vmatpush.msra.mxu0 %v1826
        %2136 = vmatpush.msra.mxu0 %v1825
        %2137 = vmatpush.msra.mxu0 %v1824
        %2138 = vmatpush.msra.mxu0 %v1823
        %2139 = vmatpush.msra.mxu0 %v1822
        %2140 = vmatpush.msra.mxu0 %v1821
        %2141 = vmatpush.msra.mxu0 %v1820
        %2142 = vmatmul.f32.gmra.mxu0 %v1962
        %v2143 = vpop.f32.mrf.mxu0
        %v2144 = vadd.f32 %v2103, %v2143
        %2145 = vmatmul.f32.gmra.mxu0 %v1965
        %v2146 = vpop.f32.mrf.mxu0
        %v2147 = vadd.f32 %v2106, %v2146
        %2148 = vmatmul.f32.gmra.mxu0 %v1968
        %v2149 = vpop.f32.mrf.mxu0
        %v2150 = vadd.f32 %v2109, %v2149
        %2151 = vmatmul.f32.gmra.mxu0 %v1971
        %v2152 = vpop.f32.mrf.mxu0
        %v2153 = vadd.f32 %v2112, %v2152
        %2154 = vmatmul.f32.gmra.mxu0 %v1974
        %v2155 = vpop.f32.mrf.mxu0
        %v2156 = vadd.f32 %v2115, %v2155
        %2157 = vmatmul.f32.gmra.mxu0 %v1977
        %v2158 = vpop.f32.mrf.mxu0
        %v2159 = vadd.f32 %v2118, %v2158
        %2160 = vmatmul.f32.gmra.mxu0 %v1980
        %v2161 = vpop.f32.mrf.mxu0
        %v2162 = vadd.f32 %v2121, %v2161
        %2163 = vmatmul.f32.gmra.mxu0 %v1983
        %v2164 = vpop.f32.mrf.mxu0
        %v2165 = vadd.f32 %v2124, %v2164
        %2166 = vdwg.mxu0
        %v2168 = vsel %vm1737, %v2052, 0
        %v2171 = vsel %vm1737, %v2053, 0
        %v2174 = vsel %vm1737, %v2054, 0
        %v2177 = vsel %vm1737, %v2055, 0
        %v2180 = vsel %vm1737, %v2056, 0
        %v2183 = vsel %vm1737, %v2057, 0
        %v2186 = vsel %vm1737, %v2058, 0
        %v2189 = vsel %vm1737, %v2059, 0
        %vm2191 = vcmask 1041408
        %v2193 = vsel %vm2191, %v1837, 0
        %2195 = vmatpush.msra.mxu0 0.0
        %2196 = vmatpush.msra.mxu0 0.0
        %2197 = vmatpush.msra.mxu0 0.0
        %2198 = vmatpush.msra.mxu0 0.0
        %2199 = vmatpush.msra.mxu0 0.0
        %2200 = vmatpush.msra.mxu0 0.0
        %2201 = vmatpush.msra.mxu0 0.0
        %2202 = vmatpush.msra.mxu0 0.0
        %2203 = vmatpush.msra.mxu0 0.0
        %2204 = vmatpush.msra.mxu0 0.0
        %2205 = vmatpush.msra.mxu0 0.0
        %2206 = vmatpush.msra.mxu0 0.0
        %2207 = vmatpush.msra.mxu0 0.0
        %2208 = vmatpush.msra.mxu0 0.0
        %2209 = vmatpush.msra.mxu0 0.0
        %2210 = vmatpush.msra.mxu0 %v2193
        %2211 = vmatmul.f32.gmra.mxu0 %v2168
        %v2212 = vpop.f32.mrf.mxu0
        %v2213 = vadd.f32 0.0, %v2212
        %2214 = vmatmul.f32.gmra.mxu0 %v2171
        %v2215 = vpop.f32.mrf.mxu0
        %v2216 = vadd.f32 0.0, %v2215
        %2217 = vmatmul.f32.gmra.mxu0 %v2174
        %v2218 = vpop.f32.mrf.mxu0
        %v2219 = vadd.f32 0.0, %v2218
        %2220 = vmatmul.f32.gmra.mxu0 %v2177
        %v2221 = vpop.f32.mrf.mxu0
        %v2222 = vadd.f32 0.0, %v2221
        %2223 = vmatmul.f32.gmra.mxu0 %v2180
        %v2224 = vpop.f32.mrf.mxu0
        %v2225 = vadd.f32 0.0, %v2224
        %2226 = vmatmul.f32.gmra.mxu0 %v2183
        %v2227 = vpop.f32.mrf.mxu0
        %v2228 = vadd.f32 0.0, %v2227
        %2229 = vmatmul.f32.gmra.mxu0 %v2186
        %v2230 = vpop.f32.mrf.mxu0
        %v2231 = vadd.f32 0.0, %v2230
        %2232 = vmatmul.f32.gmra.mxu0 %v2189
        %v2233 = vpop.f32.mrf.mxu0
        %v2234 = vadd.f32 0.0, %v2233
        %2235 = vdwg.mxu0
        %v2236 = vadd.f32 %v2144, %v2213
        %v2237 = vadd.f32 %v2147, %v2216
        %v2238 = vadd.f32 %v2150, %v2219
        %v2239 = vadd.f32 %v2153, %v2222
        %v2240 = vadd.f32 %v2156, %v2225
        %v2241 = vadd.f32 %v2159, %v2228
        %v2242 = vadd.f32 %v2162, %v2231
        %v2243 = vadd.f32 %v2165, %v2234
        %v2244 = vperm.slane %v694, 7
        %v2245 = vadd.f32 %v2236, %v2244
        %v2246 = vadd.f32 %v2237, %v2244
        %v2247 = vadd.f32 %v2238, %v2244
        %v2248 = vadd.f32 %v2239, %v2244
        %v2249 = vadd.f32 %v2240, %v2244
        %v2250 = vadd.f32 %v2241, %v2244
        %v2251 = vadd.f32 %v2242, %v2244
        %v2252 = vadd.f32 %v2243, %v2244
        %2253 = vst [vmem:[%s646] sm:$0xff] %v2245
        %2254 = vst [vmem:[%s646 + $0x8] sm:$0xff] %v2246
        %2255 = vst [vmem:[%s646 + $0x10] sm:$0xff] %v2247
        %2256 = vst [vmem:[%s646 + $0x18] sm:$0xff] %v2248
        %2257 = vst [vmem:[%s646 + $0x20] sm:$0xff] %v2249
        %2258 = vst [vmem:[%s646 + $0x28] sm:$0xff] %v2250
        %2259 = vst [vmem:[%s646 + $0x30] sm:$0xff] %v2251
        %2260 = vst [vmem:[%s646 + $0x38] sm:$0xff] %v2252
        %s2261 = sand.u32 %s357, 1
        %s2262 = scalar_lea.sflag [#allocation4], %s2261
        %s2263 = sand.u32 %s357, 1
        %s2264 = smul.addr %s2263, 64
        %s2265 = scalar_lea.vmem [#allocation16], %s2264
        // Predicated region
        $region109: #{tpu_custom_call.1} parent=75 // pred_check
          %p2266 = pneg %p367
        $region110: #{tpu_custom_call.1} parent=75 // pred_check_branch
          %2268 = sbr.rel (%p2266) target = $region112
        $region111: #{tpu_custom_call.1} parent=75 // pred_region
          %2270 = vsyncadd %s2262, 0
          %s2271 = smul.addr %s35, 8
          %s2272 = smul.addr %s2271, 8
          %s2273 = scalar_lea.hbm %s14, %s2272
          %s2274 = sshll.u32 %s2265, 4
          %s2275 = int_to_ptr.vmem [resolvable:$true] %s2274
          %s2276 = sshll.u32 %s2273, 4
          %s2277 = int_to_ptr.hbm [resolvable:$true] %s2276
          %2282 = dma.vmem_to_hbm [thread:$0]  %s2275, 1024, %s2277, %s2262, 128, 128, 8
        $region112: #{tpu_custom_call.1} parent=75 // pred_fallthru
          _
      $region76: #{tpu_custom_call.1} parent=5 // pred_fallthru
        _
      %p2283 = scmp.le.s32.totalorder 2, %s30
      // Predicated region
      $region113: #{tpu_custom_call.1} parent=5 // pred_check
        %p2284 = pneg %p2283
      $region114: #{tpu_custom_call.1} parent=5 // pred_check_branch
        %2286 = sbr.rel (%p2284) target = $region116
      $region115: #{tpu_custom_call.1} parent=5 // pred_region
        %s2287 = ssub.s32 %s30, 2
        // Predicated region
        $region117: #{tpu_custom_call.1} parent=115 // pred_check
          %p2288 = pneg %p373
        $region118: #{tpu_custom_call.1} parent=115 // pred_check_branch
          %2290 = sbr.rel (%p2288) target = $region120
        $region119: #{tpu_custom_call.1} parent=115 // pred_region
          %s2291 = sand.u32 %s358, 1
          %s2292 = scalar_lea.sflag [#allocation4], %s2291
          %s2293 = sand.u32 %s358, 1
          %s2294 = smul.addr %s2293, 64
          %s2295 = scalar_lea.vmem [#allocation16], %s2294
          %2297 = dma.done %s2292, 1024
        $region120: #{tpu_custom_call.1} parent=115 // pred_fallthru
          _
      $region116: #{tpu_custom_call.1} parent=5 // pred_fallthru
        _
    $region6: #{tpu_custom_call.1} parent=1 // loop_footer
      %s34 = sadd.s32 1, %s30
    $region7: #{tpu_custom_call.1} parent=1 // loop_footer_branch
      %29 = sbr.rel target = $region3
    $region8: #{tpu_custom_call.1} parent=1 // loop_exit
      _
    %2298 = vsyncpa [#allocation3], 1
    %s2299 = scalar_lea.sflag [#allocation3], 1
    %2300 = vsyncpa %s2299, 1
    %2301 = vsyncpa [#allocation6], 1
    %2302 = vsyncpa [#allocation9], 1
    %2303 = vsyncpa [#allocation12], 1
    %2304 = vsyncpa [#allocation15], 1
    %2305 = vsyncpa [#allocation4], 1
    %s2306 = scalar_lea.sflag [#allocation4], 1
    %2307 = vsyncpa %s2306, 1

</llo_original>
